<compile_context>
chip_gen: v7x
topology: tpu7x:2x2x1
jax: 0.10.0
libtpu: 0.0.40
codegen_flags: <defaults>
</compile_context>

<pallas_src>
import functools

import jax
import jax.numpy as jnp
from jax.experimental import pallas as pl
from jax.experimental.pallas import tpu as pltpu


_EPS = 1e-8  # cosine-similarity norm clamp (matches F.cosine_similarity eps)


def _round_up(x, m):
    return ((x + m - 1) // m) * m


def _pick_tile(total, target):
    """Largest multiple of 128 <= target that divides `total` (total % 128 == 0)."""
    target = max(128, (int(target) // 128) * 128)
    t = min(target, total)
    while total % t != 0:
        t -= 128
    return t


def _fgwf_kernel(graph_ref, tran_k_ref, tran_i_ref, graph_b_ref,
                 prob_ref, prob_b_ref, emb_ref, emb_b_ref,
                 out_ref,
                 a_acc_ref, f1_acc_ref, loss_acc_ref,
                 *, compute_dtype):
    f32 = jnp.float32
    i = pl.program_id(0)
    k = pl.program_id(1)
    ni = pl.num_programs(0)
    nk = pl.num_programs(1)

    # One-time init of the running scalar loss (SMEM scratch).
    @pl.when(jnp.logical_and(i == 0, k == 0))
    def _init_loss():
        loss_acc_ref[0] = jnp.float32(0.0)

    # Per-row-tile init of the K-reduction accumulators.
    @pl.when(k == 0)
    def _init_row_tile():
        a_acc_ref[...] = jnp.zeros_like(a_acc_ref)
        f1_acc_ref[...] = jnp.zeros_like(f1_acc_ref)

    g = graph_ref[...]          # (tm, tk)
    t_k = tran_k_ref[...]       # (tk, NB)  rows k of tran
    p_k = prob_ref[...]         # (1, tk)   prob in row (lane) layout

    # A[i-rows, :] += graph[i-rows, k-cols] @ tran[k-rows, :]   (MXU)
    a_acc_ref[...] += jnp.dot(g.astype(compute_dtype), t_k.astype(compute_dtype),
                              preferred_element_type=f32)

    # f1[i-rows] += sum_k graph[i,k]^2 * prob[k]
    # (VPU square+multiply and a lane reduce; no graph**2 temp, no 1-wide matmul.)
    f1_acc_ref[...] += jnp.sum(g * g * p_k, axis=1, keepdims=True)

    # Last K step: fold everything for this row tile into the scalar loss.
    @pl.when(k == nk - 1)
    def _finalize_row_tile():
        t_i = tran_i_ref[...]     # (tm, NB)  rows i of tran (resident across k)
        gb = graph_b_ref[...]     # (NB, NB)
        pb = prob_b_ref[...]      # (1, NB)
        e = emb_ref[...]          # (tm, D)
        eb = emb_b_ref[...]       # (NB, D)

        # GW cross term via trace identity (no transposed matmul, no cost matrix):
        #   sum((G T Gb^T) * T) == sum((G T) * (T Gb))
        b = jnp.dot(t_i.astype(compute_dtype), gb.astype(compute_dtype),
                    preferred_element_type=f32)                       # (tm, NB)
        s3 = jnp.sum(a_acc_ref[...] * b)

        # Rank-1 terms folded into scalars:
        #   sum((f1 + f2^T) * T) == f1 . rowsum(T) + f2 . colsum(T)
        r = jnp.sum(t_i, axis=1, keepdims=True)                       # (tm, 1)
        s1 = jnp.sum(f1_acc_ref[...] * r)
        s4 = jnp.sum(r)                                               # sum(tran tile)

        f2 = jnp.sum(gb * gb * pb, axis=1, keepdims=True)             # (NB, 1)
        ct = jnp.sum(t_i, axis=0, keepdims=True)                      # (1, NB)
        s2 = jnp.sum(jnp.dot(ct, f2, preferred_element_type=f32))

        # Fused embedding (cosine) term with eps-clamped, pre-normalised rows:
        #   sum(0.5*(1 - cos) * T) == 0.5*sum(T) - 0.5*sum(e_hat * (T @ eb_hat))
        e_hat = e * (1.0 / jnp.maximum(
            jnp.sqrt(jnp.sum(e * e, axis=1, keepdims=True)), _EPS))
        eb_hat = eb * (1.0 / jnp.maximum(
            jnp.sqrt(jnp.sum(eb * eb, axis=1, keepdims=True)), _EPS))
        teb = jnp.dot(t_i, eb_hat, preferred_element_type=f32)        # (tm, D)
        s5 = jnp.sum(e_hat * teb)

        loss_acc_ref[0] += s1 + s2 - 2.0 * s3 + 0.5 * (s4 - s5)

        # Single (1,1) output store, only at the very last grid step.
        @pl.when(i == ni - 1)
        def _write_out():
            out_ref[...] = jnp.full((1, 1), loss_acc_ref[0], dtype=f32)


def fgwf_forward(graph, embedding, prob, graph_b, embedding_b, prob_b, tran,
                 ole_coeff, idx, weights, *,
                 tile_m=None, tile_k=None, compute_dtype=jnp.float32):
    """Pallas TPU equivalent of FGWF.forward: returns (cost_mat(...) * tran).sum().

    compute_dtype=jnp.bfloat16 may be used on v6e/v7x for ~3x MXU throughput on
    the large matmuls (f32 accumulation is kept); validate with relaxed tolerance.
    """
    del idx  # only bookkeeping in the torch module

    # --- dead code in the reference forward (computed, never returned) -------
    # TODO(synk): ole_loss (Categorical entropies of weights) is unused by the
    # returned value; reproduced in plain JAX only for fidelity.
    mid = weights.shape[0]
    cluster_weights = jnp.stack([jnp.sum(weights[:mid]), jnp.sum(weights[mid:])])

    def _entropy(p):
        p = p / jnp.sum(p)
        logp = jnp.log(jnp.clip(p, jnp.finfo(p.dtype).tiny, None))
        return -jnp.sum(jnp.where(p > 0, p * logp, 0.0))

    _ole_loss = ole_coeff * (_entropy(cluster_weights) - _entropy(weights))  # unused
    # --------------------------------------------------------------------------

    f32 = jnp.float32
    graph = graph.astype(f32)
    graph_b = graph_b.astype(f32)
    tran = tran.astype(f32)
    prob = prob.astype(f32)
    prob_b = prob_b.astype(f32)
    embedding = embedding.astype(f32)
    embedding_b = embedding_b.astype(f32)

    N = graph.shape[0]
    NB = graph_b.shape[0]
    D = embedding.shape[1]

    # --- tiling over the (zero-padded) source-graph node dimension -----------
    Np = _round_up(N, 128)
    tm = _pick_tile(Np, tile_m if tile_m is not None else 256)   # row tile
    tk = _pick_tile(Np, tile_k if tile_k is not None else 512)   # contraction tile
    ni, nk = Np // tm, Np // tk

    pad = Np - N
    if pad:
        # Zero padding is exactly neutral for every term of the loss.
        graph = jnp.pad(graph, ((0, pad), (0, pad)))
        tran = jnp.pad(tran, ((0, pad), (0, 0)))
        embedding = jnp.pad(embedding, ((0, pad), (0, 0)))
        prob = jnp.pad(prob, ((0, pad), (0, 0)))

    prob_row = prob.reshape(1, Np)        # lane-major row vectors
    prob_b_row = prob_b.reshape(1, NB)

    kernel = functools.partial(_fgwf_kernel, compute_dtype=compute_dtype)

    cost = pl.CostEstimate(
        flops=int(2 * Np * Np * NB + 2 * Np * NB * NB + 2 * Np * NB * D
                  + 4 * Np * Np + 8 * Np * NB),
        transcendentals=int(Np + NB * ni),
        bytes_accessed=int(4 * (Np * Np + 2 * Np * NB + NB * NB
                                + (Np + NB) * D + Np + NB + 1)),
    )

    grid_spec = pltpu.PrefetchScalarGridSpec(
        num_scalar_prefetch=0,
        grid=(ni, nk),
        in_specs=[
            pl.BlockSpec((tm, tk), lambda i, k: (i, k)),   # graph tile
            pl.BlockSpec((tk, NB), lambda i, k: (k, 0)),   # tran, k-rows (A accum)
            pl.BlockSpec((tm, NB), lambda i, k: (i, 0)),   # tran, i-rows (finalize)
            pl.BlockSpec((NB, NB), lambda i, k: (0, 0)),   # graph_b (resident)
            pl.BlockSpec((1, tk), lambda i, k: (0, k)),    # prob (row layout)
            pl.BlockSpec((1, NB), lambda i, k: (0, 0)),    # prob_b (row layout)
            pl.BlockSpec((tm, D), lambda i, k: (i, 0)),    # embedding rows
            pl.BlockSpec((NB, D), lambda i, k: (0, 0)),    # embedding_b (resident)
        ],
        out_specs=pl.BlockSpec((1, 1), lambda i, k: (0, 0)),
        scratch_shapes=[
            pltpu.VMEM((tm, NB), f32),    # A = graph @ tran accumulator
            pltpu.VMEM((tm, 1), f32),     # f1 accumulator
            pltpu.SMEM((1,), f32),        # running scalar loss
        ],
    )

    out = pl.pallas_call(
        kernel,
        out_shape=jax.ShapeDtypeStruct((1, 1), f32),
        grid_spec=grid_spec,
        compiler_params=pltpu.CompilerParams(
            # The row axis also reduces into the single scalar output, so it
            # must stay "arbitrary".  TODO(synk): emit per-row-tile partial
            # sums to make the row axis "parallel" for v7x's two TensorCores.
            dimension_semantics=("arbitrary", "arbitrary"),
            vmem_limit_bytes=32 * 1024 * 1024,
        ),
        cost_estimate=cost,
    )(graph, tran, tran, graph_b, prob_row, prob_b_row, embedding, embedding_b)
    return out[0, 0]


def _ref_forward(graph, embedding, prob, graph_b, embedding_b, prob_b, tran,
                 eps=_EPS):
    """Plain-JAX reference (mirrors the torch cost_mat + (cost * tran).sum())."""
    f1 = (graph ** 2) @ prob
    f2 = prob_b.T @ (graph_b ** 2).T
    cost = f1 + f2 - 2.0 * (graph @ tran @ graph_b.T)
    n_s = jnp.maximum(jnp.sqrt(jnp.sum(embedding ** 2, axis=1, keepdims=True)), eps)
    n_b = jnp.maximum(jnp.sqrt(jnp.sum(embedding_b ** 2, axis=1, keepdims=True)), eps)
    cos = (embedding @ embedding_b.T) / (n_s @ n_b.T)
    cost = cost + 0.5 * (1.0 - cos)
    return jnp.sum(cost * tran)


if __name__ == "__main__":
    key = jax.random.PRNGKey(0)
    ks = jax.random.split(key, 8)

    # Small shapes consistent with the module: 200-node source graph (padded to
    # 256 internally), 96-node barycenter, dim_embedding = 8.
    N, NB, D = 200, 96, 8
    num_atoms = 4

    graph = jax.nn.sigmoid(jax.random.normal(ks[0], (N, N), jnp.float32))
    graph_b = jax.nn.sigmoid(jax.random.normal(ks[1], (NB, NB), jnp.float32))
    embedding = jax.random.normal(ks[2], (N, D), jnp.float32)
    embedding_b = jax.random.normal(ks[3], (NB, D), jnp.float32)
    prob = jnp.ones((N, 1), jnp.float32) / N
    prob_b = jnp.ones((NB, 1), jnp.float32) / NB
    tran = prob @ prob_b.T                      # a valid coupling
    weights = jax.nn.softmax(jax.random.normal(ks[4], (num_atoms,), jnp.float32))
    ole_coeff = 0.1
    idx = 0

    with jax.default_matmul_precision("highest"):
        ref = _ref_forward(graph, embedding, prob, graph_b, embedding_b,
                           prob_b, tran)
    ref = jax.block_until_ready(ref)

    # (a) forced 128x128 tiles -> a (2, 2) grid over the padded 256-node graph;
    #     exercises the K-reduction accumulators and the zero-padding path.
    out_tiled = fgwf_forward(graph, embedding, prob, graph_b, embedding_b,
                             prob_b, tran, ole_coeff, idx, weights,
                             tile_m=128, tile_k=128)
    out_tiled = jax.block_until_ready(out_tiled)
    assert jnp.allclose(out_tiled, ref, rtol=1e-4, atol=1e-5), (out_tiled, ref)

    # (b) default (auto-selected) tiling.
    out_auto = fgwf_forward(graph, embedding, prob, graph_b, embedding_b,
                            prob_b, tran, ole_coeff, idx, weights)
    out_auto = jax.block_until_ready(out_auto)
    assert jnp.allclose(out_auto, ref, rtol=1e-4, atol=1e-5), (out_auto, ref)

    print("KERNEL_OK")
</pallas_src>

<mosaic_0001>
module attributes {stable_mosaic.version = 11 : i64} {
  func.func @_fgwf_kernel(%arg0: i32, %arg1: i32, %arg2: memref<128x128xf32, #tpu.memory_space<vmem>>, %arg3: memref<128x96xf32, #tpu.memory_space<vmem>>, %arg4: memref<128x96xf32, #tpu.memory_space<vmem>>, %arg5: memref<96x96xf32, #tpu.memory_space<vmem>>, %arg6: memref<1x128xf32, #tpu.memory_space<vmem>>, %arg7: memref<1x96xf32, #tpu.memory_space<vmem>>, %arg8: memref<128x8xf32, #tpu.memory_space<vmem>>, %arg9: memref<96x8xf32, #tpu.memory_space<vmem>>, %arg10: memref<1x1xf32, #tpu.memory_space<vmem>>, %arg11: memref<128x96xf32, #tpu.memory_space<vmem>>, %arg12: memref<128x1xf32, #tpu.memory_space<vmem>>, %arg13: memref<1xf32, #tpu.memory_space<smem>>) attributes {dimension_semantics = [#tpu.dimension_semantics<arbitrary>, #tpu.dimension_semantics<arbitrary>], iteration_bounds = array<i64: 2, 2>, scalar_prefetch = 0 : i64, scratch_operands = 3 : i64, tpu.core_type = #tpu.core_type<tc>, window_params = [{transform_indices = @transform_0, window_bounds = array<i64: 128, 128>}, {transform_indices = @transform_1, window_bounds = array<i64: 128, 96>}, {transform_indices = @transform_2, window_bounds = array<i64: 128, 96>}, {pipeline_mode = #tpu.pipeline_mode<synchronous>, transform_indices = @transform_3, window_bounds = array<i64: 96, 96>}, {transform_indices = @transform_4, window_bounds = array<i64: 1, 128>}, {pipeline_mode = #tpu.pipeline_mode<synchronous>, transform_indices = @transform_5, window_bounds = array<i64: 1, 96>}, {transform_indices = @transform_6, window_bounds = array<i64: 128, 8>}, {pipeline_mode = #tpu.pipeline_mode<synchronous>, transform_indices = @transform_7, window_bounds = array<i64: 96, 8>}, {pipeline_mode = #tpu.pipeline_mode<synchronous>, transform_indices = @transform_8, window_bounds = array<i64: 1, 1>}]} {
    %c0_i32 = arith.constant 0 : i32
    %0 = arith.cmpi eq, %arg0, %c0_i32 : i32
    %c0_i32_0 = arith.constant 0 : i32
    %1 = arith.cmpi eq, %arg1, %c0_i32_0 : i32
    %2 = arith.andi %0, %1 : i1
    %3 = arith.extui %2 : i1 to i32
    %c0_i32_1 = arith.constant 0 : i32
    %4 = arith.cmpi ne, %3, %c0_i32_1 : i32
    scf.if %4 {
      %cst_19 = arith.constant 0.000000e+00 : f32
      %c0_20 = arith.constant 0 : index
      %26 = memref.load %arg13[%c0_20] : memref<1xf32, #tpu.memory_space<smem>>
      memref.store %cst_19, %arg13[%c0_20] : memref<1xf32, #tpu.memory_space<smem>>
    } else {
    }
    %c0_i32_2 = arith.constant 0 : i32
    %5 = arith.cmpi eq, %arg1, %c0_i32_2 : i32
    %6 = arith.extui %5 : i1 to i32
    %c0_i32_3 = arith.constant 0 : i32
    %7 = arith.cmpi ne, %6, %c0_i32_3 : i32
    scf.if %7 {
      %cst_19 = arith.constant 0.000000e+00 : f32
      %26 = vector.broadcast %cst_19 : f32 to vector<128x96xf32>
      %c0_20 = arith.constant 0 : index
      %c0_21 = arith.constant 0 : index
      %27 = vector.load %arg11[%c0_20, %c0_21] : memref<128x96xf32, #tpu.memory_space<vmem>>, vector<128x96xf32>
      tpu.vector_store %arg11[%c0_20, %c0_21], %26 {strides = array<i32>} : memref<128x96xf32, #tpu.memory_space<vmem>>, vector<128x96xf32>,
      %cst_22 = arith.constant 0.000000e+00 : f32
      %28 = vector.broadcast %cst_22 : f32 to vector<128x1xf32>
      %c0_23 = arith.constant 0 : index
      %c0_24 = arith.constant 0 : index
      %29 = vector.load %arg12[%c0_23, %c0_24] : memref<128x1xf32, #tpu.memory_space<vmem>>, vector<128x1xf32>
      tpu.vector_store %arg12[%c0_23, %c0_24], %28 {strides = array<i32>} : memref<128x1xf32, #tpu.memory_space<vmem>>, vector<128x1xf32>,
    } else {
    }
    %c0 = arith.constant 0 : index
    %c0_4 = arith.constant 0 : index
    %8 = vector.load %arg2[%c0, %c0_4] : memref<128x128xf32, #tpu.memory_space<vmem>>, vector<128x128xf32>
    %c0_5 = arith.constant 0 : index
    %c0_6 = arith.constant 0 : index
    %9 = vector.load %arg3[%c0_5, %c0_6] : memref<128x96xf32, #tpu.memory_space<vmem>>, vector<128x96xf32>
    %c0_7 = arith.constant 0 : index
    %c0_8 = arith.constant 0 : index
    %10 = vector.load %arg6[%c0_7, %c0_8] : memref<1x128xf32, #tpu.memory_space<vmem>>, vector<1x128xf32>
    %c0_9 = arith.constant 0 : index
    %c0_10 = arith.constant 0 : index
    %11 = vector.load %arg11[%c0_9, %c0_10] : memref<128x96xf32, #tpu.memory_space<vmem>>, vector<128x96xf32>
    %cst = arith.constant dense<0.000000e+00> : vector<128x96xf32>
    %12 = tpu.matmul %8, %9, %cst {dimension_numbers = #tpu.dot_dimension_numbers<[1], [0], [0], [1], [0, 0, 1, 1], [], []>} : vector<128x128xf32>, vector<128x96xf32>, vector<128x96xf32> -> vector<128x96xf32>
    %13 = arith.addf %11, %12 : vector<128x96xf32>
    %c0_11 = arith.constant 0 : index
    %c0_12 = arith.constant 0 : index
    %14 = vector.load %arg11[%c0_11, %c0_12] : memref<128x96xf32, #tpu.memory_space<vmem>>, vector<128x96xf32>
    tpu.vector_store %arg11[%c0_11, %c0_12], %13 {strides = array<i32>} : memref<128x96xf32, #tpu.memory_space<vmem>>, vector<128x96xf32>,
    %c0_13 = arith.constant 0 : index
    %c0_14 = arith.constant 0 : index
    %15 = vector.load %arg12[%c0_13, %c0_14] : memref<128x1xf32, #tpu.memory_space<vmem>>, vector<128x1xf32>
    %16 = arith.mulf %8, %8 : vector<128x128xf32>
    %17 = vector.broadcast %10 : vector<1x128xf32> to vector<128x128xf32>
    %18 = arith.mulf %16, %17 : vector<128x128xf32>
    %cst_15 = arith.constant dense<0.000000e+00> : vector<128xf32>
    %19 = vector.multi_reduction <add>, %18, %cst_15 [1] : vector<128x128xf32> to vector<128xf32>
    %20 = vector.shape_cast %19 : vector<128xf32> to vector<128x1xf32>
    %21 = arith.addf %15, %20 : vector<128x1xf32>
    %c0_16 = arith.constant 0 : index
    %c0_17 = arith.constant 0 : index
    %22 = vector.load %arg12[%c0_16, %c0_17] : memref<128x1xf32, #tpu.memory_space<vmem>>, vector<128x1xf32>
    tpu.vector_store %arg12[%c0_16, %c0_17], %21 {strides = array<i32>} : memref<128x1xf32, #tpu.memory_space<vmem>>, vector<128x1xf32>,
    %c1_i32 = arith.constant 1 : i32
    %23 = arith.cmpi eq, %arg1, %c1_i32 : i32
    %24 = arith.extui %23 : i1 to i32
    %c0_i32_18 = arith.constant 0 : i32
    %25 = arith.cmpi ne, %24, %c0_i32_18 : i32
    scf.if %25 {
      %c0_19 = arith.constant 0 : index
      %c0_20 = arith.constant 0 : index
      %26 = vector.load %arg4[%c0_19, %c0_20] : memref<128x96xf32, #tpu.memory_space<vmem>>, vector<128x96xf32>
      %c0_21 = arith.constant 0 : index
      %c0_22 = arith.constant 0 : index
      %27 = vector.load %arg5[%c0_21, %c0_22] : memref<96x96xf32, #tpu.memory_space<vmem>>, vector<96x96xf32>
      %c0_23 = arith.constant 0 : index
      %c0_24 = arith.constant 0 : index
      %28 = vector.load %arg7[%c0_23, %c0_24] : memref<1x96xf32, #tpu.memory_space<vmem>>, vector<1x96xf32>
      %c0_25 = arith.constant 0 : index
      %c0_26 = arith.constant 0 : index
      %29 = vector.load %arg8[%c0_25, %c0_26] : memref<128x8xf32, #tpu.memory_space<vmem>>, vector<128x8xf32>
      %c0_27 = arith.constant 0 : index
      %c0_28 = arith.constant 0 : index
      %30 = vector.load %arg9[%c0_27, %c0_28] : memref<96x8xf32, #tpu.memory_space<vmem>>, vector<96x8xf32>
      %cst_29 = arith.constant dense<0.000000e+00> : vector<128x96xf32>
      %31 = tpu.matmul %26, %27, %cst_29 {dimension_numbers = #tpu.dot_dimension_numbers<[1], [0], [0], [1], [0, 0, 1, 1], [], []>} : vector<128x96xf32>, vector<96x96xf32>, vector<128x96xf32> -> vector<128x96xf32>
      %c0_30 = arith.constant 0 : index
      %c0_31 = arith.constant 0 : index
      %32 = vector.load %arg11[%c0_30, %c0_31] : memref<128x96xf32, #tpu.memory_space<vmem>>, vector<128x96xf32>
      %33 = arith.mulf %32, %31 : vector<128x96xf32>
      %34 = vector.shape_cast %33 : vector<128x96xf32> to vector<1x128x96xf32>
      %cst_32 = arith.constant dense<0.000000e+00> : vector<1xf32>
      %35 = vector.multi_reduction <add>, %34, %cst_32 [1, 2] : vector<1x128x96xf32> to vector<1xf32>
      %36 = vector.shape_cast %35 : vector<1xf32> to vector<1x1x1xf32>
      %37 = vector.extract %36[0, 0, 0] : f32 from vector<1x1x1xf32>
      %cst_33 = arith.constant dense<0.000000e+00> : vector<128xf32>
      %38 = vector.multi_reduction <add>, %26, %cst_33 [1] : vector<128x96xf32> to vector<128xf32>
      %39 = vector.shape_cast %38 : vector<128xf32> to vector<128x1xf32>
      %c0_34 = arith.constant 0 : index
      %c0_35 = arith.constant 0 : index
      %40 = vector.load %arg12[%c0_34, %c0_35] : memref<128x1xf32, #tpu.memory_space<vmem>>, vector<128x1xf32>
      %41 = arith.mulf %40, %39 : vector<128x1xf32>
      %42 = vector.shape_cast %41 : vector<128x1xf32> to vector<1x128x1xf32>
      %cst_36 = arith.constant dense<0.000000e+00> : vector<1xf32>
      %43 = vector.multi_reduction <add>, %42, %cst_36 [1, 2] : vector<1x128x1xf32> to vector<1xf32>
      %44 = vector.shape_cast %43 : vector<1xf32> to vector<1x1x1xf32>
      %45 = vector.extract %44[0, 0, 0] : f32 from vector<1x1x1xf32>
      %46 = vector.shape_cast %39 : vector<128x1xf32> to vector<1x128x1xf32>
      %cst_37 = arith.constant dense<0.000000e+00> : vector<1xf32>
      %47 = vector.multi_reduction <add>, %46, %cst_37 [1, 2] : vector<1x128x1xf32> to vector<1xf32>
      %48 = vector.shape_cast %47 : vector<1xf32> to vector<1x1x1xf32>
      %49 = vector.extract %48[0, 0, 0] : f32 from vector<1x1x1xf32>
      %50 = arith.mulf %27, %27 : vector<96x96xf32>
      %51 = vector.broadcast %28 : vector<1x96xf32> to vector<96x96xf32>
      %52 = arith.mulf %50, %51 : vector<96x96xf32>
      %cst_38 = arith.constant dense<0.000000e+00> : vector<96xf32>
      %53 = vector.multi_reduction <add>, %52, %cst_38 [1] : vector<96x96xf32> to vector<96xf32>
      %54 = vector.shape_cast %53 : vector<96xf32> to vector<96x1xf32>
      %cst_39 = arith.constant dense<0.000000e+00> : vector<96xf32>
      %55 = vector.multi_reduction <add>, %26, %cst_39 [0] : vector<128x96xf32> to vector<96xf32>
      %56 = vector.shape_cast %55 : vector<96xf32> to vector<1x96xf32>
      %cst_40 = arith.constant dense<0.000000e+00> : vector<1x1xf32>
      %57 = tpu.matmul %56, %54, %cst_40 {dimension_numbers = #tpu.dot_dimension_numbers<[1], [0], [0], [1], [0, 0, 1, 1], [], []>} : vector<1x96xf32>, vector<96x1xf32>, vector<1x1xf32> -> vector<1x1xf32>
      %58 = vector.shape_cast %57 : vector<1x1xf32> to vector<1x1x1xf32>
      %cst_41 = arith.constant dense<0.000000e+00> : vector<1xf32>
      %59 = vector.multi_reduction <add>, %58, %cst_41 [1, 2] : vector<1x1x1xf32> to vector<1xf32>
      %60 = vector.shape_cast %59 : vector<1xf32> to vector<1x1x1xf32>
      %61 = vector.extract %60[0, 0, 0] : f32 from vector<1x1x1xf32>
      %62 = arith.mulf %29, %29 : vector<128x8xf32>
      %cst_42 = arith.constant dense<0.000000e+00> : vector<128xf32>
      %63 = vector.multi_reduction <add>, %62, %cst_42 [1] : vector<128x8xf32> to vector<128xf32>
      %64 = vector.shape_cast %63 : vector<128xf32> to vector<128x1xf32>
      %65 = math.sqrt %64 : vector<128x1xf32>
      %cst_43 = arith.constant 9.99999993E-9 : f32
      %66 = vector.broadcast %cst_43 : f32 to vector<128x1xf32>
      %67 = arith.maximumf %65, %66 : vector<128x1xf32>
      %cst_44 = arith.constant 1.000000e+00 : f32
      %68 = vector.broadcast %cst_44 : f32 to vector<128x1xf32>
      %69 = arith.divf %68, %67 : vector<128x1xf32>
      %70 = vector.broadcast %69 : vector<128x1xf32> to vector<128x8xf32>
      %71 = arith.mulf %29, %70 : vector<128x8xf32>
      %72 = arith.mulf %30, %30 : vector<96x8xf32>
      %cst_45 = arith.constant dense<0.000000e+00> : vector<96xf32>
      %73 = vector.multi_reduction <add>, %72, %cst_45 [1] : vector<96x8xf32> to vector<96xf32>
      %74 = vector.shape_cast %73 : vector<96xf32> to vector<96x1xf32>
      %75 = math.sqrt %74 : vector<96x1xf32>
      %cst_46 = arith.constant 9.99999993E-9 : f32
      %76 = vector.broadcast %cst_46 : f32 to vector<96x1xf32>
      %77 = arith.maximumf %75, %76 : vector<96x1xf32>
      %cst_47 = arith.constant 1.000000e+00 : f32
      %78 = vector.broadcast %cst_47 : f32 to vector<96x1xf32>
      %79 = arith.divf %78, %77 : vector<96x1xf32>
      %80 = vector.broadcast %79 : vector<96x1xf32> to vector<96x8xf32>
      %81 = arith.mulf %30, %80 : vector<96x8xf32>
      %cst_48 = arith.constant dense<0.000000e+00> : vector<128x8xf32>
      %82 = tpu.matmul %26, %81, %cst_48 {dimension_numbers = #tpu.dot_dimension_numbers<[1], [0], [0], [1], [0, 0, 1, 1], [], []>} : vector<128x96xf32>, vector<96x8xf32>, vector<128x8xf32> -> vector<128x8xf32>
      %83 = arith.mulf %71, %82 : vector<128x8xf32>
      %84 = vector.shape_cast %83 : vector<128x8xf32> to vector<1x128x8xf32>
      %cst_49 = arith.constant dense<0.000000e+00> : vector<1xf32>
      %85 = vector.multi_reduction <add>, %84, %cst_49 [1, 2] : vector<1x128x8xf32> to vector<1xf32>
      %86 = vector.shape_cast %85 : vector<1xf32> to vector<1x1x1xf32>
      %87 = vector.extract %86[0, 0, 0] : f32 from vector<1x1x1xf32>
      %c0_50 = arith.constant 0 : index
      %88 = memref.load %arg13[%c0_50] : memref<1xf32, #tpu.memory_space<smem>>
      %89 = arith.addf %45, %61 : f32
      %cst_51 = arith.constant 2.000000e+00 : f32
      %90 = arith.mulf %cst_51, %37 : f32
      %91 = arith.subf %89, %90 : f32
      %92 = arith.subf %49, %87 : f32
      %cst_52 = arith.constant 5.000000e-01 : f32
      %93 = arith.mulf %cst_52, %92 : f32
      %94 = arith.addf %91, %93 : f32
      %95 = arith.addf %88, %94 : f32
      %c0_53 = arith.constant 0 : index
      %96 = memref.load %arg13[%c0_53] : memref<1xf32, #tpu.memory_space<smem>>
      memref.store %95, %arg13[%c0_53] : memref<1xf32, #tpu.memory_space<smem>>
      %c1_i32_54 = arith.constant 1 : i32
      %97 = arith.cmpi eq, %arg0, %c1_i32_54 : i32
      %98 = arith.extui %97 : i1 to i32
      %c0_i32_55 = arith.constant 0 : i32
      %99 = arith.cmpi ne, %98, %c0_i32_55 : i32
      scf.if %99 {
        %c0_56 = arith.constant 0 : index
        %100 = memref.load %arg13[%c0_56] : memref<1xf32, #tpu.memory_space<smem>>
        %101 = vector.broadcast %100 : f32 to vector<1x1xf32>
        %c0_57 = arith.constant 0 : index
        %c0_58 = arith.constant 0 : index
        %102 = vector.load %arg10[%c0_57, %c0_58] : memref<1x1xf32, #tpu.memory_space<vmem>>, vector<1x1xf32>
        tpu.vector_store %arg10[%c0_57, %c0_58], %101 {strides = array<i32>} : memref<1x1xf32, #tpu.memory_space<vmem>>, vector<1x1xf32>,
      } else {
      }
    } else {
    }
    return
  }
  func.func @transform_0(%arg0: i32, %arg1: i32) -> (i32, i32) {
    %c0_i32 = arith.constant 0 : i32
    return %arg0, %arg1 : i32, i32
  }
  func.func @transform_1(%arg0: i32, %arg1: i32) -> (i32, i32) {
    %c0_i32 = arith.constant 0 : i32
    %c0_i32_0 = arith.constant 0 : i32
    return %arg1, %c0_i32 : i32, i32
  }
  func.func @transform_2(%arg0: i32, %arg1: i32) -> (i32, i32) {
    %c0_i32 = arith.constant 0 : i32
    %c0_i32_0 = arith.constant 0 : i32
    return %arg0, %c0_i32 : i32, i32
  }
  func.func @transform_3(%arg0: i32, %arg1: i32) -> (i32, i32) {
    %c0_i32 = arith.constant 0 : i32
    %c0_i32_0 = arith.constant 0 : i32
    %c0_i32_1 = arith.constant 0 : i32
    return %c0_i32, %c0_i32_0 : i32, i32
  }
  func.func @transform_4(%arg0: i32, %arg1: i32) -> (i32, i32) {
    %c0_i32 = arith.constant 0 : i32
    %c0_i32_0 = arith.constant 0 : i32
    return %c0_i32, %arg1 : i32, i32
  }
  func.func @transform_5(%arg0: i32, %arg1: i32) -> (i32, i32) {
    %c0_i32 = arith.constant 0 : i32
    %c0_i32_0 = arith.constant 0 : i32
    %c0_i32_1 = arith.constant 0 : i32
    return %c0_i32, %c0_i32_0 : i32, i32
  }
  func.func @transform_6(%arg0: i32, %arg1: i32) -> (i32, i32) {
    %c0_i32 = arith.constant 0 : i32
    %c0_i32_0 = arith.constant 0 : i32
    return %arg0, %c0_i32 : i32, i32
  }
  func.func @transform_7(%arg0: i32, %arg1: i32) -> (i32, i32) {
    %c0_i32 = arith.constant 0 : i32
    %c0_i32_0 = arith.constant 0 : i32
    %c0_i32_1 = arith.constant 0 : i32
    return %c0_i32, %c0_i32_0 : i32, i32
  }
  func.func @transform_8(%arg0: i32, %arg1: i32) -> (i32, i32) {
    %c0_i32 = arith.constant 0 : i32
    %c0_i32_0 = arith.constant 0 : i32
    %c0_i32_1 = arith.constant 0 : i32
    return %c0_i32, %c0_i32_0 : i32, i32
  }
}

</mosaic_0001>

<llo_original>
// kernel: tpu_custom_call.1
$region0: #{tpu_custom_call.1}
  #allocation0 [shape = 'u32[]', space=smem, size = 0x4, offset = 0x4, fixed_abs, tag = 'smem constant byte address 0x4 - core index']
  #allocation1 [shape = 'u32[144,128]{1,0:T(1,128)}', space=vmem, size = 0x12000, scoped, tag = 'internal scratch']
  #allocation2 [shape = 'f32[128,96]{1,0:T(8,128)}', space=vmem, size = 0x10000, scoped, tag = 'scratch operand']
  #allocation3 [shape = 'f32[128,1]{1,0:T(8,128)}', space=vmem, size = 0x10000, scoped, tag = 'scratch operand']
  #allocation4 [shape = 'f32[1]{0:T(128)}', space=smem, size = 0x200, scoped, tag = 'scratch operand']
  %s0 = inlined_call_operand.vmem [shape: f32[256,256], index: 0, kind: input, shape index: {}]
  %s1 = inlined_call_operand.vmem [shape: f32[256,96], index: 1, kind: input, shape index: {}]
  %s2 = inlined_call_operand.vmem [shape: f32[256,96], index: 2, kind: input, shape index: {}]
  %s3 = inlined_call_operand.vmem [shape: f32[96,96], index: 3, kind: input, shape index: {}]
  %s4 = inlined_call_operand.vmem [shape: f32[1,256], index: 4, kind: input, shape index: {}]
  %s5 = inlined_call_operand.vmem [shape: f32[1,96], index: 5, kind: input, shape index: {}]
  %s6 = inlined_call_operand.vmem [shape: f32[256,8], index: 6, kind: input, shape index: {}]
  %s7 = inlined_call_operand.vmem [shape: f32[96,8], index: 7, kind: input, shape index: {}]
  %s8 = inlined_call_operand.hbm [shape: f32[1,1], index: 8, kind: output, shape index: {}]
  %s9 = sld [smem:[#allocation0]]
  $region119: #{tpu_custom_call.1} parent=0
    _
  %s11 = ssub.s32 1, %s9
  %s12 = scalar_select 0, %s11, %s9
  $region1: #{tpu_custom_call.1} parent=0
    #allocation5 [shape = 'u8[131072]{0}', space=vmem, size = 0x20000, scoped, tag = 'input window, operand 0']
    #allocation6 [shape = 'u8[512]{0}', space=vmem, size = 0x400, scoped, tag = 'output window, operand 0, single buffered']
    #allocation7 [shape = 's32[2]{0}', space=sflag, size = 0x8, scoped, tag = 'scoped memory for tpu_custom_call.1']
    %13 = vsyncpa [#allocation7], 0
    loop: start=0, step=1, limit=6
    $region2: #{tpu_custom_call.1} parent=1 // loop_pre_header
      _
    $region3: #{tpu_custom_call.1} parent=1 // loop_header
      %s15 = sphi 0, %s19
      %p16 = scmp.ge.s32.totalorder %s15, 6
      %s22 = sphi 0, %s34
      %s23 = sphi 0, %s30
      %s24 = sphi 0, %s22
      %s25 = sphi 0, %s23
      %s26 = sphi 0, %s24
      %s27 = sphi 0, %s25
      %s39 = sphi 0, %s41
      %s42 = sphi 0, %s39
      %s43 = sphi 0, %s42
      %s59 = sphi 0, %s43
      %s65 = sphi 0, %s67
      %s68 = sphi 0, %s65
      %s69 = sphi 0, %s68
      %s85 = sphi 0, %s69
      %s91 = sphi 0, %s93
      %s94 = sphi 0, %s91
      %s95 = sphi 0, %s94
      %s111 = sphi 0, %s95
      %s115 = sphi 0, %s115
      %s117 = sphi 0, %s115
      %s118 = sphi 0, %s117
      %s132 = sphi 0, %s118
      %s138 = sphi 0, %s140
      %s141 = sphi 0, %s138
      %s142 = sphi 0, %s141
      %s158 = sphi 0, %s142
      %s162 = sphi 0, %s162
      %s164 = sphi 0, %s162
      %s165 = sphi 0, %s164
      %s179 = sphi 0, %s165
      %s185 = sphi 0, %s187
      %s188 = sphi 0, %s185
      %s189 = sphi 0, %s188
      %s205 = sphi 0, %s189
      %s209 = sphi 0, %s209
      %s211 = sphi 0, %s209
      %s212 = sphi 0, %s211
      %s226 = sphi 0, %s212
      %s230 = sphi 0, %s230
      %s232 = sphi 0, %s230
      %s233 = sphi 0, %s232
      %s247 = sphi 0, %s233
    $region4: #{tpu_custom_call.1} parent=1 // loop_header_branch
      %18 = sbr.rel (%p16) target = $region8
    $region5: #{tpu_custom_call.1} parent=1 // loop_body
      %s20 = ssub.s32 %s15, 1
      %s21 = ssub.s32 %s15, 2
      %s28 = sadd.s32 1, %s23
      %p29 = scmp.ge.s32.totalorder %s28, 2
      %s30 = scalar_select %p29, 0, %s28
      %s31 = sadd.s32 1, %s22
      %s32 = scalar_select %p29, %s31, %s22
      %p33 = scmp.ge.s32.totalorder %s32, 2
      %s34 = scalar_select %p33, 0, %s32
      %s35 = ssub.s32 %s22, %s34
      %s36 = ssub.s32 %s23, %s30
      %s37 = sor.u32 %s35, %s36
      %p38 = scmp.eq.s32.totalorder %s37, 0
      %s40 = sadd.s32 %s39, 1
      %s41 = scalar_select %p38, %s39, %s40
      %p44 = pneg %p38
      %p45 = scmp.eq.s32.totalorder %s15, 3
      %p46 = por %p44, %p45
      %p47 = scmp.ne.s32.totalorder %s39, %s42
      %p48 = scmp.eq.s32.totalorder %s15, 0
      %p49 = por %p47, %p48
      %p50 = scmp.ne.s32.totalorder %s39, %s42
      %p51 = scmp.eq.s32.totalorder %s20, 3
      %p52 = por %p50, %p51
      %p53 = scmp.ne.s32.totalorder %s42, %s43
      %p54 = scmp.eq.s32.totalorder %s20, 0
      %p55 = por %p53, %p54
      %p56 = scmp.ne.s32.totalorder %s42, %s43
      %p57 = scmp.eq.s32.totalorder %s21, 3
      %p58 = por %p56, %p57
      %p60 = scmp.ne.s32.totalorder %s43, %s59
      %p61 = scmp.eq.s32.totalorder %s21, 0
      %p62 = por %p60, %p61
      %s63 = ssub.s32 %s23, %s30
      %p64 = scmp.eq.s32.totalorder %s63, 0
      %s66 = sadd.s32 %s65, 1
      %s67 = scalar_select %p64, %s65, %s66
      %p70 = pneg %p64
      %p71 = scmp.eq.s32.totalorder %s15, 3
      %p72 = por %p70, %p71
      %p73 = scmp.ne.s32.totalorder %s65, %s68
      %p74 = scmp.eq.s32.totalorder %s15, 0
      %p75 = por %p73, %p74
      %p76 = scmp.ne.s32.totalorder %s65, %s68
      %p77 = scmp.eq.s32.totalorder %s20, 3
      %p78 = por %p76, %p77
      %p79 = scmp.ne.s32.totalorder %s68, %s69
      %p80 = scmp.eq.s32.totalorder %s20, 0
      %p81 = por %p79, %p80
      %p82 = scmp.ne.s32.totalorder %s68, %s69
      %p83 = scmp.eq.s32.totalorder %s21, 3
      %p84 = por %p82, %p83
      %p86 = scmp.ne.s32.totalorder %s69, %s85
      %p87 = scmp.eq.s32.totalorder %s21, 0
      %p88 = por %p86, %p87
      %s89 = ssub.s32 %s22, %s34
      %p90 = scmp.eq.s32.totalorder %s89, 0
      %s92 = sadd.s32 %s91, 1
      %s93 = scalar_select %p90, %s91, %s92
      %p96 = pneg %p90
      %p97 = scmp.eq.s32.totalorder %s15, 3
      %p98 = por %p96, %p97
      %p99 = scmp.ne.s32.totalorder %s91, %s94
      %p100 = scmp.eq.s32.totalorder %s15, 0
      %p101 = por %p99, %p100
      %p102 = scmp.ne.s32.totalorder %s91, %s94
      %p103 = scmp.eq.s32.totalorder %s20, 3
      %p104 = por %p102, %p103
      %p105 = scmp.ne.s32.totalorder %s94, %s95
      %p106 = scmp.eq.s32.totalorder %s20, 0
      %p107 = por %p105, %p106
      %p108 = scmp.ne.s32.totalorder %s94, %s95
      %p109 = scmp.eq.s32.totalorder %s21, 3
      %p110 = por %p108, %p109
      %p112 = scmp.ne.s32.totalorder %s95, %s111
      %p113 = scmp.eq.s32.totalorder %s21, 0
      %p114 = por %p112, %p113
      %s116 = sadd.s32 %s115, 1
      %p119 = scmp.eq.s32.totalorder %s15, 3
      %p120 = scmp.ne.s32.totalorder %s115, %s117
      %p121 = scmp.eq.s32.totalorder %s15, 0
      %p122 = por %p120, %p121
      %p123 = scmp.ne.s32.totalorder %s115, %s117
      %p124 = scmp.eq.s32.totalorder %s20, 3
      %p125 = por %p123, %p124
      %p126 = scmp.ne.s32.totalorder %s117, %s118
      %p127 = scmp.eq.s32.totalorder %s20, 0
      %p128 = por %p126, %p127
      %p129 = scmp.ne.s32.totalorder %s117, %s118
      %p130 = scmp.eq.s32.totalorder %s21, 3
      %p131 = por %p129, %p130
      %p133 = scmp.ne.s32.totalorder %s118, %s132
      %p134 = scmp.eq.s32.totalorder %s21, 0
      %p135 = por %p133, %p134
      %s136 = ssub.s32 %s23, %s30
      %p137 = scmp.eq.s32.totalorder %s136, 0
      %s139 = sadd.s32 %s138, 1
      %s140 = scalar_select %p137, %s138, %s139
      %p143 = pneg %p137
      %p144 = scmp.eq.s32.totalorder %s15, 3
      %p145 = por %p143, %p144
      %p146 = scmp.ne.s32.totalorder %s138, %s141
      %p147 = scmp.eq.s32.totalorder %s15, 0
      %p148 = por %p146, %p147
      %p149 = scmp.ne.s32.totalorder %s138, %s141
      %p150 = scmp.eq.s32.totalorder %s20, 3
      %p151 = por %p149, %p150
      %p152 = scmp.ne.s32.totalorder %s141, %s142
      %p153 = scmp.eq.s32.totalorder %s20, 0
      %p154 = por %p152, %p153
      %p155 = scmp.ne.s32.totalorder %s141, %s142
      %p156 = scmp.eq.s32.totalorder %s21, 3
      %p157 = por %p155, %p156
      %p159 = scmp.ne.s32.totalorder %s142, %s158
      %p160 = scmp.eq.s32.totalorder %s21, 0
      %p161 = por %p159, %p160
      %s163 = sadd.s32 %s162, 1
      %p166 = scmp.eq.s32.totalorder %s15, 3
      %p167 = scmp.ne.s32.totalorder %s162, %s164
      %p168 = scmp.eq.s32.totalorder %s15, 0
      %p169 = por %p167, %p168
      %p170 = scmp.ne.s32.totalorder %s162, %s164
      %p171 = scmp.eq.s32.totalorder %s20, 3
      %p172 = por %p170, %p171
      %p173 = scmp.ne.s32.totalorder %s164, %s165
      %p174 = scmp.eq.s32.totalorder %s20, 0
      %p175 = por %p173, %p174
      %p176 = scmp.ne.s32.totalorder %s164, %s165
      %p177 = scmp.eq.s32.totalorder %s21, 3
      %p178 = por %p176, %p177
      %p180 = scmp.ne.s32.totalorder %s165, %s179
      %p181 = scmp.eq.s32.totalorder %s21, 0
      %p182 = por %p180, %p181
      %s183 = ssub.s32 %s22, %s34
      %p184 = scmp.eq.s32.totalorder %s183, 0
      %s186 = sadd.s32 %s185, 1
      %s187 = scalar_select %p184, %s185, %s186
      %p190 = pneg %p184
      %p191 = scmp.eq.s32.totalorder %s15, 3
      %p192 = por %p190, %p191
      %p193 = scmp.ne.s32.totalorder %s185, %s188
      %p194 = scmp.eq.s32.totalorder %s15, 0
      %p195 = por %p193, %p194
      %p196 = scmp.ne.s32.totalorder %s185, %s188
      %p197 = scmp.eq.s32.totalorder %s20, 3
      %p198 = por %p196, %p197
      %p199 = scmp.ne.s32.totalorder %s188, %s189
      %p200 = scmp.eq.s32.totalorder %s20, 0
      %p201 = por %p199, %p200
      %p202 = scmp.ne.s32.totalorder %s188, %s189
      %p203 = scmp.eq.s32.totalorder %s21, 3
      %p204 = por %p202, %p203
      %p206 = scmp.ne.s32.totalorder %s189, %s205
      %p207 = scmp.eq.s32.totalorder %s21, 0
      %p208 = por %p206, %p207
      %s210 = sadd.s32 %s209, 1
      %p213 = scmp.eq.s32.totalorder %s15, 3
      %p214 = scmp.ne.s32.totalorder %s209, %s211
      %p215 = scmp.eq.s32.totalorder %s15, 0
      %p216 = por %p214, %p215
      %p217 = scmp.ne.s32.totalorder %s209, %s211
      %p218 = scmp.eq.s32.totalorder %s20, 3
      %p219 = por %p217, %p218
      %p220 = scmp.ne.s32.totalorder %s211, %s212
      %p221 = scmp.eq.s32.totalorder %s20, 0
      %p222 = por %p220, %p221
      %p223 = scmp.ne.s32.totalorder %s211, %s212
      %p224 = scmp.eq.s32.totalorder %s21, 3
      %p225 = por %p223, %p224
      %p227 = scmp.ne.s32.totalorder %s212, %s226
      %p228 = scmp.eq.s32.totalorder %s21, 0
      %p229 = por %p227, %p228
      %s231 = sadd.s32 %s230, 1
      %p234 = scmp.eq.s32.totalorder %s15, 3
      %p235 = scmp.ne.s32.totalorder %s230, %s232
      %p236 = scmp.eq.s32.totalorder %s15, 0
      %p237 = por %p235, %p236
      %p238 = scmp.ne.s32.totalorder %s230, %s232
      %p239 = scmp.eq.s32.totalorder %s20, 3
      %p240 = por %p238, %p239
      %p241 = scmp.ne.s32.totalorder %s232, %s233
      %p242 = scmp.eq.s32.totalorder %s20, 0
      %p243 = por %p241, %p242
      %p244 = scmp.ne.s32.totalorder %s232, %s233
      %p245 = scmp.eq.s32.totalorder %s21, 3
      %p246 = por %p244, %p245
      %p248 = scmp.ne.s32.totalorder %s233, %s247
      %p249 = scmp.eq.s32.totalorder %s21, 0
      %p250 = por %p248, %p249
      %p251 = scmp.le.s32.totalorder 1, %s15
      %p252 = scmp.lt.s32.totalorder %s15, 5
      %p253 = pnand %p251, %p252
      %p254 = pneg %p253
      // Predicated region
      $region9: #{tpu_custom_call.1} parent=5 // pred_check
        _
      $region10: #{tpu_custom_call.1} parent=5 // pred_check_branch
        %256 = sbr.rel (%p253) target = $region12
      $region11: #{tpu_custom_call.1} parent=5 // pred_region
        %s257 = ssub.s32 %s15, 1
        // Predicated region
        $region13: #{tpu_custom_call.1} parent=11 // pred_check
          %p258 = pneg %p128
        $region14: #{tpu_custom_call.1} parent=11 // pred_check_branch
          %260 = sbr.rel (%p258) target = $region16
        $region15: #{tpu_custom_call.1} parent=11 // pred_region
          _
        $region16: #{tpu_custom_call.1} parent=11 // pred_fallthru
          _
        // Predicated region
        $region17: #{tpu_custom_call.1} parent=11 // pred_check
          %p261 = pneg %p175
        $region18: #{tpu_custom_call.1} parent=11 // pred_check_branch
          %263 = sbr.rel (%p261) target = $region20
        $region19: #{tpu_custom_call.1} parent=11 // pred_region
          _
        $region20: #{tpu_custom_call.1} parent=11 // pred_fallthru
          _
        // Predicated region
        $region21: #{tpu_custom_call.1} parent=11 // pred_check
          %p264 = pneg %p222
        $region22: #{tpu_custom_call.1} parent=11 // pred_check_branch
          %266 = sbr.rel (%p264) target = $region24
        $region23: #{tpu_custom_call.1} parent=11 // pred_region
          _
        $region24: #{tpu_custom_call.1} parent=11 // pred_fallthru
          _
      $region12: #{tpu_custom_call.1} parent=5 // pred_fallthru
        _
      %p267 = scmp.lt.s32.totalorder %s15, 4
      // Predicated region
      $region25: #{tpu_custom_call.1} parent=5 // pred_check
        %p268 = pneg %p267
      $region26: #{tpu_custom_call.1} parent=5 // pred_check_branch
        %270 = sbr.rel (%p268) target = $region28
      $region27: #{tpu_custom_call.1} parent=5 // pred_region
        // Predicated region
        $region29: #{tpu_custom_call.1} parent=27 // pred_check
          %p271 = pneg %p49
        $region30: #{tpu_custom_call.1} parent=27 // pred_check_branch
          %273 = sbr.rel (%p271) target = $region32
        $region31: #{tpu_custom_call.1} parent=27 // pred_region
          %s274 = sand.u32 %s39, 1
          %s275 = sand.u32 %s39, 1
          %s276 = smul.addr %s275, 128
          %s277 = scalar_lea.vmem [#allocation5], %s276
          %s278 = smul.u32 16, %s22
          %s279 = smul.addr %s278, 2
          %s280 = sadd.s32 %s23, %s279
          %s281 = smul.addr %s280, 8
          %s282 = scalar_lea.vmem %s0, %s281
          // Predicated region
          $region33: #{tpu_custom_call.1} parent=31 // pred_check
            _
          $region34: #{tpu_custom_call.1} parent=31 // pred_check_branch
            %284 = sbr.rel (0) target = $region36
          $region35: #{tpu_custom_call.1} parent=31 // pred_region
            // Predicated region
            $region37: #{tpu_custom_call.1} parent=35 // pred_check
              _
            $region38: #{tpu_custom_call.1} parent=35 // pred_check_branch
              %286 = sbr.rel (0) target = $region40
            $region39: #{tpu_custom_call.1} parent=35 // pred_region
              // Predicated region
              $region52: #{tpu_custom_call.1} parent=39 // pred_check
                _
              $region53: #{tpu_custom_call.1} parent=39 // pred_check_branch
                %331 = sbr.rel (0) target = $region55
              $region54: #{tpu_custom_call.1} parent=39 // pred_region
                loop: start=0, step=1, limit=1
                $region56: #{tpu_custom_call.1} parent=54 // loop_pre_header
                  _
                $region57: #{tpu_custom_call.1} parent=54 // loop_header
                  %s333 = sphi 0, %s337
                  %p334 = scmp.ge.s32.totalorder %s333, 1
                  %s338 = sphi %s282, %s282
                  %s339 = sphi %s277, %s277
                $region58: #{tpu_custom_call.1} parent=54 // loop_header_branch
                  %336 = sbr.rel (%p334) target = $region62
                $region59: #{tpu_custom_call.1} parent=54 // loop_body
                  %v340 = vld [vmem:[%s338] sm:$0xff]
                  %341 = vst [vmem:[%s339] sm:$0xff] %v340
                  %v342 = vld [vmem:[%s338 + $0x10] sm:$0xff]
                  %343 = vst [vmem:[%s339 + $0x8] sm:$0xff] %v342
                  %v344 = vld [vmem:[%s338 + $0x20] sm:$0xff]
                  %345 = vst [vmem:[%s339 + $0x10] sm:$0xff] %v344
                  %v346 = vld [vmem:[%s338 + $0x30] sm:$0xff]
                  %347 = vst [vmem:[%s339 + $0x18] sm:$0xff] %v346
                  %v348 = vld [vmem:[%s338 + $0x40] sm:$0xff]
                  %349 = vst [vmem:[%s339 + $0x20] sm:$0xff] %v348
                  %v350 = vld [vmem:[%s338 + $0x50] sm:$0xff]
                  %351 = vst [vmem:[%s339 + $0x28] sm:$0xff] %v350
                  %v352 = vld [vmem:[%s338 + $0x60] sm:$0xff]
                  %353 = vst [vmem:[%s339 + $0x30] sm:$0xff] %v352
                  %v354 = vld [vmem:[%s338 + $0x70] sm:$0xff]
                  %355 = vst [vmem:[%s339 + $0x38] sm:$0xff] %v354
                  %v356 = vld [vmem:[%s338 + $0x80] sm:$0xff]
                  %357 = vst [vmem:[%s339 + $0x40] sm:$0xff] %v356
                  %v358 = vld [vmem:[%s338 + $0x90] sm:$0xff]
                  %359 = vst [vmem:[%s339 + $0x48] sm:$0xff] %v358
                  %v360 = vld [vmem:[%s338 + $0xa0] sm:$0xff]
                  %361 = vst [vmem:[%s339 + $0x50] sm:$0xff] %v360
                  %v362 = vld [vmem:[%s338 + $0xb0] sm:$0xff]
                  %363 = vst [vmem:[%s339 + $0x58] sm:$0xff] %v362
                  %v364 = vld [vmem:[%s338 + $0xc0] sm:$0xff]
                  %365 = vst [vmem:[%s339 + $0x60] sm:$0xff] %v364
                  %v366 = vld [vmem:[%s338 + $0xd0] sm:$0xff]
                  %367 = vst [vmem:[%s339 + $0x68] sm:$0xff] %v366
                  %v368 = vld [vmem:[%s338 + $0xe0] sm:$0xff]
                  %369 = vst [vmem:[%s339 + $0x70] sm:$0xff] %v368
                  %v370 = vld [vmem:[%s338 + $0xf0] sm:$0xff]
                  %371 = vst [vmem:[%s339 + $0x78] sm:$0xff] %v370
                $region60: #{tpu_custom_call.1} parent=54 // loop_footer
                  %s337 = sadd.s32 1, %s333
                $region61: #{tpu_custom_call.1} parent=54 // loop_footer_branch
                  %332 = sbr.rel target = $region57
                $region62: #{tpu_custom_call.1} parent=54 // loop_exit
                  _
              $region55: #{tpu_custom_call.1} parent=39 // pred_fallthru
                _
              // Predicated region
              $region63: #{tpu_custom_call.1} parent=39 // pred_check
                _
              $region64: #{tpu_custom_call.1} parent=39 // pred_check_branch
                %373 = sbr.rel target = $region66
              $region65: #{tpu_custom_call.1} parent=39 // pred_region
                _
              $region66: #{tpu_custom_call.1} parent=39 // pred_fallthru
                _
            $region40: #{tpu_custom_call.1} parent=35 // pred_fallthru
              _
            // Predicated region
            $region41: #{tpu_custom_call.1} parent=35 // pred_check
              _
            $region42: #{tpu_custom_call.1} parent=35 // pred_check_branch
              %288 = sbr.rel target = $region44
            $region43: #{tpu_custom_call.1} parent=35 // pred_region
              loop: start=0, step=1, limit=1
              $region45: #{tpu_custom_call.1} parent=43 // loop_pre_header
                _
              $region46: #{tpu_custom_call.1} parent=43 // loop_header
                %s291 = sphi 0, %s295
                %p292 = scmp.ge.s32.totalorder %s291, 1
                %s296 = sphi %s282, %s282
                %s297 = sphi %s277, %s277
              $region47: #{tpu_custom_call.1} parent=43 // loop_header_branch
                %294 = sbr.rel (%p292) target = $region51
              $region48: #{tpu_custom_call.1} parent=43 // loop_body
                %v298 = vld [vmem:[%s296] sm:$0xff]
                %299 = vst [vmem:[%s297] sm:$0xff] %v298
                %v300 = vld [vmem:[%s296 + $0x10] sm:$0xff]
                %301 = vst [vmem:[%s297 + $0x8] sm:$0xff] %v300
                %v302 = vld [vmem:[%s296 + $0x20] sm:$0xff]
                %303 = vst [vmem:[%s297 + $0x10] sm:$0xff] %v302
                %v304 = vld [vmem:[%s296 + $0x30] sm:$0xff]
                %305 = vst [vmem:[%s297 + $0x18] sm:$0xff] %v304
                %v306 = vld [vmem:[%s296 + $0x40] sm:$0xff]
                %307 = vst [vmem:[%s297 + $0x20] sm:$0xff] %v306
                %v308 = vld [vmem:[%s296 + $0x50] sm:$0xff]
                %309 = vst [vmem:[%s297 + $0x28] sm:$0xff] %v308
                %v310 = vld [vmem:[%s296 + $0x60] sm:$0xff]
                %311 = vst [vmem:[%s297 + $0x30] sm:$0xff] %v310
                %v312 = vld [vmem:[%s296 + $0x70] sm:$0xff]
                %313 = vst [vmem:[%s297 + $0x38] sm:$0xff] %v312
                %v314 = vld [vmem:[%s296 + $0x80] sm:$0xff]
                %315 = vst [vmem:[%s297 + $0x40] sm:$0xff] %v314
                %v316 = vld [vmem:[%s296 + $0x90] sm:$0xff]
                %317 = vst [vmem:[%s297 + $0x48] sm:$0xff] %v316
                %v318 = vld [vmem:[%s296 + $0xa0] sm:$0xff]
                %319 = vst [vmem:[%s297 + $0x50] sm:$0xff] %v318
                %v320 = vld [vmem:[%s296 + $0xb0] sm:$0xff]
                %321 = vst [vmem:[%s297 + $0x58] sm:$0xff] %v320
                %v322 = vld [vmem:[%s296 + $0xc0] sm:$0xff]
                %323 = vst [vmem:[%s297 + $0x60] sm:$0xff] %v322
                %v324 = vld [vmem:[%s296 + $0xd0] sm:$0xff]
                %325 = vst [vmem:[%s297 + $0x68] sm:$0xff] %v324
                %v326 = vld [vmem:[%s296 + $0xe0] sm:$0xff]
                %327 = vst [vmem:[%s297 + $0x70] sm:$0xff] %v326
                %v328 = vld [vmem:[%s296 + $0xf0] sm:$0xff]
                %329 = vst [vmem:[%s297 + $0x78] sm:$0xff] %v328
              $region49: #{tpu_custom_call.1} parent=43 // loop_footer
                %s295 = sadd.s32 1, %s291
              $region50: #{tpu_custom_call.1} parent=43 // loop_footer_branch
                %290 = sbr.rel target = $region46
              $region51: #{tpu_custom_call.1} parent=43 // loop_exit
                _
            $region44: #{tpu_custom_call.1} parent=35 // pred_fallthru
              _
          $region36: #{tpu_custom_call.1} parent=31 // pred_fallthru
            _
          %374 = vnop
        $region32: #{tpu_custom_call.1} parent=27 // pred_fallthru
          _
        // Predicated region
        $region67: #{tpu_custom_call.1} parent=27 // pred_check
          %p375 = pneg %p75
        $region68: #{tpu_custom_call.1} parent=27 // pred_check_branch
          %377 = sbr.rel (%p375) target = $region70
        $region69: #{tpu_custom_call.1} parent=27 // pred_region
          %s378 = smul.u32 16, %s23
          %p379 = scmp.lt.s32.totalorder %s378, 31
          %s380 = scalar_select %p379, %s378, 31
          %s381 = smul.addr %s380, 8
          %s382 = scalar_lea.vmem %s1, %s381
          %s383 = smul.u32 16, %s23
        $region70: #{tpu_custom_call.1} parent=27 // pred_fallthru
          _
        // Predicated region
        $region71: #{tpu_custom_call.1} parent=27 // pred_check
          %p384 = pneg %p101
        $region72: #{tpu_custom_call.1} parent=27 // pred_check_branch
          %386 = sbr.rel (%p384) target = $region74
        $region73: #{tpu_custom_call.1} parent=27 // pred_region
          %s387 = smul.u32 16, %s22
          %p388 = scmp.lt.s32.totalorder %s387, 31
          %s389 = scalar_select %p388, %s387, 31
          %s390 = smul.addr %s389, 8
          %s391 = scalar_lea.vmem %s2, %s390
          %s392 = smul.u32 16, %s22
        $region74: #{tpu_custom_call.1} parent=27 // pred_fallthru
          _
        // Predicated region
        $region75: #{tpu_custom_call.1} parent=27 // pred_check
          %p393 = pneg %p148
        $region76: #{tpu_custom_call.1} parent=27 // pred_check_branch
          %395 = sbr.rel (%p393) target = $region78
        $region77: #{tpu_custom_call.1} parent=27 // pred_region
          %p396 = scmp.lt.s32.totalorder %s23, 1
          %s397 = scalar_select %p396, %s23, 1
          %s398 = scalar_lea.vmem %s4, %s397
        $region78: #{tpu_custom_call.1} parent=27 // pred_fallthru
          _
        // Predicated region
        $region79: #{tpu_custom_call.1} parent=27 // pred_check
          %p399 = pneg %p195
        $region80: #{tpu_custom_call.1} parent=27 // pred_check_branch
          %401 = sbr.rel (%p399) target = $region82
        $region81: #{tpu_custom_call.1} parent=27 // pred_region
          %s402 = smul.u32 16, %s22
          %p403 = scmp.lt.s32.totalorder %s402, 31
          %s404 = scalar_select %p403, %s402, 31
          %s405 = smul.addr %s404, 8
          %s406 = scalar_lea.vmem %s6, %s405
          %s407 = smul.u32 16, %s22
        $region82: #{tpu_custom_call.1} parent=27 // pred_fallthru
          _
      $region28: #{tpu_custom_call.1} parent=5 // pred_fallthru
        _
      %p408 = scmp.le.s32.totalorder 1, %s15
      %p409 = scmp.lt.s32.totalorder %s15, 5
      %p410 = pnand %p408, %p409
      %p411 = pneg %p410
      // Predicated region
      $region83: #{tpu_custom_call.1} parent=5 // pred_check
        _
      $region84: #{tpu_custom_call.1} parent=5 // pred_check_branch
        %413 = sbr.rel (%p410) target = $region86
      $region85: #{tpu_custom_call.1} parent=5 // pred_region
        %s414 = ssub.s32 %s15, 1
        %s415 = sand.u32 %s42, 1
        %s416 = sand.u32 %s42, 1
        %s417 = smul.addr %s416, 128
        %s418 = scalar_lea.vmem [#allocation5], %s417
        // Predicated region
        $region87: #{tpu_custom_call.1} parent=85 // pred_check
          %p419 = pneg %p55
        $region88: #{tpu_custom_call.1} parent=85 // pred_check_branch
          %421 = sbr.rel (%p419) target = $region90
        $region89: #{tpu_custom_call.1} parent=85 // pred_region
          _
        $region90: #{tpu_custom_call.1} parent=85 // pred_fallthru
          _
        %s422 = sand.u32 %s42, 1
        %s423 = sand.u32 %s42, 1
        %s424 = smul.addr %s423, 128
        %s425 = scalar_lea.vmem [#allocation5], %s424
        %p426 = pneg %p55
        %p427 = pneg %p52
        %s428 = smul.u32 16, %s25
        %p429 = scmp.lt.s32.totalorder %s428, 31
        %s430 = scalar_select %p429, %s428, 31
        %s431 = smul.addr %s430, 8
        %s432 = scalar_lea.vmem %s1, %s431
        %p433 = pneg %p81
        %p434 = pneg %p78
        %s435 = smul.u32 16, %s24
        %p436 = scmp.lt.s32.totalorder %s435, 31
        %s437 = scalar_select %p436, %s435, 31
        %s438 = smul.addr %s437, 8
        %s439 = scalar_lea.vmem %s2, %s438
        %p440 = pneg %p107
        %p441 = pneg %p104
        %p442 = pneg %p128
        %p443 = pneg %p125
        %p444 = scmp.lt.s32.totalorder %s25, 1
        %s445 = scalar_select %p444, %s25, 1
        %s446 = scalar_lea.vmem %s4, %s445
        %p447 = pneg %p154
        %p448 = pneg %p151
        %p449 = pneg %p175
        %p450 = pneg %p172
        %s451 = smul.u32 16, %s24
        %p452 = scmp.lt.s32.totalorder %s451, 31
        %s453 = scalar_select %p452, %s451, 31
        %s454 = smul.addr %s453, 8
        %s455 = scalar_lea.vmem %s6, %s454
        %p456 = pneg %p201
        %p457 = pneg %p198
        %p458 = pneg %p222
        %p459 = pneg %p219
        %p460 = pneg %p243
        %p461 = pneg %p240
        %s462 = smul.u32 16, %s24
        %s463 = smul.u32 16, %s25
        %p464 = scmp.lt.s32.totalorder %s463, 31
        %s465 = scalar_select %p464, %s463, 31
        %s466 = smul.addr %s465, 8
        %s467 = scalar_lea.vmem %s1, %s466
        %s468 = smul.u32 16, %s25
        %s469 = smul.u32 16, %s24
        %p470 = scmp.lt.s32.totalorder %s469, 31
        %s471 = scalar_select %p470, %s469, 31
        %s472 = smul.addr %s471, 8
        %s473 = scalar_lea.vmem %s2, %s472
        %s474 = smul.u32 16, %s24
        %p475 = scmp.lt.s32.totalorder %s25, 1
        %s476 = scalar_select %p475, %s25, 1
        %s477 = scalar_lea.vmem %s4, %s476
        %s478 = smul.u32 16, %s24
        %p479 = scmp.lt.s32.totalorder %s478, 31
        %s480 = scalar_select %p479, %s478, 31
        %s481 = smul.addr %s480, 8
        %s482 = scalar_lea.vmem %s6, %s481
        %s483 = smul.u32 16, %s24
        %p484 = scmp.eq.s32.totalorder %s24, 0
        %p485 = scmp.eq.s32.totalorder %s25, 0
        %p486 = pnand %p484, %p485
        %p487 = pneg %p486
        // Predicated region
        $region91: #{tpu_custom_call.1} parent=85 // pred_check
          _
        $region92: #{tpu_custom_call.1} parent=85 // pred_check_branch
          %489 = sbr.rel (%p486) target = $region94
        $region93: #{tpu_custom_call.1} parent=85 // pred_region
          %s490 = scalar_lea.smem [#allocation4], 0
          %491 = sst [smem:[%s490]] 0.0
        $region94: #{tpu_custom_call.1} parent=85 // pred_fallthru
          _
        // Predicated region
        $region95: #{tpu_custom_call.1} parent=85 // pred_check
          %p492 = pneg %p485
        $region96: #{tpu_custom_call.1} parent=85 // pred_check_branch
          %494 = sbr.rel (%p492) target = $region98
        $region97: #{tpu_custom_call.1} parent=85 // pred_region
          %vm495 = vcmask 785408
          %496 = vst.msk [vmem:[#allocation2] sm:$0xff] %vm495, 0.0
          %497 = vst.msk [vmem:[#allocation2 + $0x8] sm:$0xff] %vm495, 0.0
          %498 = vst.msk [vmem:[#allocation2 + $0x10] sm:$0xff] %vm495, 0.0
          %499 = vst.msk [vmem:[#allocation2 + $0x18] sm:$0xff] %vm495, 0.0
          %500 = vst.msk [vmem:[#allocation2 + $0x20] sm:$0xff] %vm495, 0.0
          %501 = vst.msk [vmem:[#allocation2 + $0x28] sm:$0xff] %vm495, 0.0
          %502 = vst.msk [vmem:[#allocation2 + $0x30] sm:$0xff] %vm495, 0.0
          %503 = vst.msk [vmem:[#allocation2 + $0x38] sm:$0xff] %vm495, 0.0
          %504 = vst.msk [vmem:[#allocation2 + $0x40] sm:$0xff] %vm495, 0.0
          %505 = vst.msk [vmem:[#allocation2 + $0x48] sm:$0xff] %vm495, 0.0
          %506 = vst.msk [vmem:[#allocation2 + $0x50] sm:$0xff] %vm495, 0.0
          %507 = vst.msk [vmem:[#allocation2 + $0x58] sm:$0xff] %vm495, 0.0
          %508 = vst.msk [vmem:[#allocation2 + $0x60] sm:$0xff] %vm495, 0.0
          %509 = vst.msk [vmem:[#allocation2 + $0x68] sm:$0xff] %vm495, 0.0
          %510 = vst.msk [vmem:[#allocation2 + $0x70] sm:$0xff] %vm495, 0.0
          %511 = vst.msk [vmem:[#allocation2 + $0x78] sm:$0xff] %vm495, 0.0
          %vm512 = vcmask 7168
          %513 = vst.msk [vmem:[#allocation3] sm:$0xff] %vm512, 0.0
          %514 = vst.msk [vmem:[#allocation3 + $0x8] sm:$0xff] %vm512, 0.0
          %515 = vst.msk [vmem:[#allocation3 + $0x10] sm:$0xff] %vm512, 0.0
          %516 = vst.msk [vmem:[#allocation3 + $0x18] sm:$0xff] %vm512, 0.0
          %517 = vst.msk [vmem:[#allocation3 + $0x20] sm:$0xff] %vm512, 0.0
          %518 = vst.msk [vmem:[#allocation3 + $0x28] sm:$0xff] %vm512, 0.0
          %519 = vst.msk [vmem:[#allocation3 + $0x30] sm:$0xff] %vm512, 0.0
          %520 = vst.msk [vmem:[#allocation3 + $0x38] sm:$0xff] %vm512, 0.0
          %521 = vst.msk [vmem:[#allocation3 + $0x40] sm:$0xff] %vm512, 0.0
          %522 = vst.msk [vmem:[#allocation3 + $0x48] sm:$0xff] %vm512, 0.0
          %523 = vst.msk [vmem:[#allocation3 + $0x50] sm:$0xff] %vm512, 0.0
          %524 = vst.msk [vmem:[#allocation3 + $0x58] sm:$0xff] %vm512, 0.0
          %525 = vst.msk [vmem:[#allocation3 + $0x60] sm:$0xff] %vm512, 0.0
          %526 = vst.msk [vmem:[#allocation3 + $0x68] sm:$0xff] %vm512, 0.0
          %527 = vst.msk [vmem:[#allocation3 + $0x70] sm:$0xff] %vm512, 0.0
          %528 = vst.msk [vmem:[#allocation3 + $0x78] sm:$0xff] %vm512, 0.0
        $region98: #{tpu_custom_call.1} parent=85 // pred_fallthru
          _
        %v529 = vld [vmem:[%s418] sm:$0xff]
        %v530 = vld [vmem:[%s418 + $0x8] sm:$0xff]
        %v531 = vld [vmem:[%s418 + $0x10] sm:$0xff]
        %v532 = vld [vmem:[%s418 + $0x18] sm:$0xff]
        %v533 = vld [vmem:[%s418 + $0x20] sm:$0xff]
        %v534 = vld [vmem:[%s418 + $0x28] sm:$0xff]
        %v535 = vld [vmem:[%s418 + $0x30] sm:$0xff]
        %v536 = vld [vmem:[%s418 + $0x38] sm:$0xff]
        %v537 = vld [vmem:[%s418 + $0x40] sm:$0xff]
        %v538 = vld [vmem:[%s418 + $0x48] sm:$0xff]
        %v539 = vld [vmem:[%s418 + $0x50] sm:$0xff]
        %v540 = vld [vmem:[%s418 + $0x58] sm:$0xff]
        %v541 = vld [vmem:[%s418 + $0x60] sm:$0xff]
        %v542 = vld [vmem:[%s418 + $0x68] sm:$0xff]
        %v543 = vld [vmem:[%s418 + $0x70] sm:$0xff]
        %v544 = vld [vmem:[%s418 + $0x78] sm:$0xff]
        %v545 = vld [vmem:[%s467] sm:$0xff]
        %v546 = vld [vmem:[%s467 + $0x8] sm:$0xff]
        %v547 = vld [vmem:[%s467 + $0x10] sm:$0xff]
        %v548 = vld [vmem:[%s467 + $0x18] sm:$0xff]
        %v549 = vld [vmem:[%s467 + $0x20] sm:$0xff]
        %v550 = vld [vmem:[%s467 + $0x28] sm:$0xff]
        %v551 = vld [vmem:[%s467 + $0x30] sm:$0xff]
        %v552 = vld [vmem:[%s467 + $0x38] sm:$0xff]
        %v553 = vld [vmem:[%s467 + $0x40] sm:$0xff]
        %v554 = vld [vmem:[%s467 + $0x48] sm:$0xff]
        %v555 = vld [vmem:[%s467 + $0x50] sm:$0xff]
        %v556 = vld [vmem:[%s467 + $0x58] sm:$0xff]
        %v557 = vld [vmem:[%s467 + $0x60] sm:$0xff]
        %v558 = vld [vmem:[%s467 + $0x68] sm:$0xff]
        %v559 = vld [vmem:[%s467 + $0x70] sm:$0xff]
        %v560 = vld [vmem:[%s467 + $0x78] sm:$0xff]
        %v561 = vld [vmem:[%s477] sm:$0x1]
        %v562 = vld [vmem:[#allocation2] sm:$0xff]
        %v563 = vld [vmem:[#allocation2 + $0x8] sm:$0xff]
        %v564 = vld [vmem:[#allocation2 + $0x10] sm:$0xff]
        %v565 = vld [vmem:[#allocation2 + $0x18] sm:$0xff]
        %v566 = vld [vmem:[#allocation2 + $0x20] sm:$0xff]
        %v567 = vld [vmem:[#allocation2 + $0x28] sm:$0xff]
        %v568 = vld [vmem:[#allocation2 + $0x30] sm:$0xff]
        %v569 = vld [vmem:[#allocation2 + $0x38] sm:$0xff]
        %v570 = vld [vmem:[#allocation2 + $0x40] sm:$0xff]
        %v571 = vld [vmem:[#allocation2 + $0x48] sm:$0xff]
        %v572 = vld [vmem:[#allocation2 + $0x50] sm:$0xff]
        %v573 = vld [vmem:[#allocation2 + $0x58] sm:$0xff]
        %v574 = vld [vmem:[#allocation2 + $0x60] sm:$0xff]
        %v575 = vld [vmem:[#allocation2 + $0x68] sm:$0xff]
        %v576 = vld [vmem:[#allocation2 + $0x70] sm:$0xff]
        %v577 = vld [vmem:[#allocation2 + $0x78] sm:$0xff]
        %578 = vmatprep.subr.mxu0 0.0
        %579 = vmatpush1.msra.mxu0 %v545
        %580 = vmatprep.subr.mxu0 0.0
        %581 = vmatpush1.msra.mxu0 %v546
        %582 = vmatprep.subr.mxu0 0.0
        %583 = vmatpush1.msra.mxu0 %v547
        %584 = vmatprep.subr.mxu0 0.0
        %585 = vmatpush1.msra.mxu0 %v548
        %586 = vmatprep.subr.mxu0 0.0
        %587 = vmatpush1.msra.mxu0 %v549
        %588 = vmatprep.subr.mxu0 0.0
        %589 = vmatpush1.msra.mxu0 %v550
        %590 = vmatprep.subr.mxu0 0.0
        %591 = vmatpush1.msra.mxu0 %v551
        %592 = vmatprep.subr.mxu0 0.0
        %593 = vmatpush1.msra.mxu0 %v552
        %594 = vmatprep.subr.mxu0 0.0
        %595 = vmatpush1.msra.mxu0 %v553
        %596 = vmatprep.subr.mxu0 0.0
        %597 = vmatpush1.msra.mxu0 %v554
        %598 = vmatprep.subr.mxu0 0.0
        %599 = vmatpush1.msra.mxu0 %v555
        %600 = vmatprep.subr.mxu0 0.0
        %601 = vmatpush1.msra.mxu0 %v556
        %602 = vmatprep.subr.mxu0 0.0
        %603 = vmatpush1.msra.mxu0 %v557
        %604 = vmatprep.subr.mxu0 0.0
        %605 = vmatpush1.msra.mxu0 %v558
        %606 = vmatprep.subr.mxu0 0.0
        %607 = vmatpush1.msra.mxu0 %v559
        %608 = vmatprep.subr.mxu0 0.0
        %609 = vmatpush1.msra.mxu0 %v560
        %610 = vmatprep.subr.mxu0 0.0
        %611 = vmatpush1.msra.mxu0 0.0
        %612 = vmatprep.subr.mxu0 0.0
        %613 = vmatpush1.msra.mxu0 0.0
        %614 = vmatprep.subr.mxu0 0.0
        %615 = vmatpush1.msra.mxu0 0.0
        %616 = vmatprep.subr.mxu0 0.0
        %617 = vmatpush1.msra.mxu0 0.0
        %618 = vmatprep.subr.mxu0 0.0
        %619 = vmatpush1.msra.mxu0 0.0
        %620 = vmatprep.subr.mxu0 0.0
        %621 = vmatpush1.msra.mxu0 0.0
        %622 = vmatprep.subr.mxu0 0.0
        %623 = vmatpush1.msra.mxu0 0.0
        %624 = vmatprep.subr.mxu0 0.0
        %625 = vmatpush1.msra.mxu0 0.0
        %626 = vmatprep.subr.mxu0 0.0
        %627 = vmatpush1.msra.mxu0 0.0
        %628 = vmatprep.subr.mxu0 0.0
        %629 = vmatpush1.msra.mxu0 0.0
        %630 = vmatprep.subr.mxu0 0.0
        %631 = vmatpush1.msra.mxu0 0.0
        %632 = vmatprep.subr.mxu0 0.0
        %633 = vmatpush1.msra.mxu0 0.0
        %634 = vmatprep.subr.mxu0 0.0
        %635 = vmatpush1.msra.mxu0 0.0
        %636 = vmatprep.subr.mxu0 0.0
        %637 = vmatpush1.msra.mxu0 0.0
        %638 = vmatprep.subr.mxu0 0.0
        %639 = vmatpush1.msra.mxu0 0.0
        %640 = vmatprep.subr.mxu0 0.0
        %641 = vmatpush1.msra.mxu0 0.0
        %642 = vmatprep.mubr.f32.mxu0 0.0
        %643 = vmatmul.mubr.f32.gmra.mrb[0].mxu0 %v529
        %v644 = vpop.f32.mrb[0].mxu0
        %v645 = vadd.f32 0.0, %v644
        %v646 = vpop.f32.mrb[0].mxu0
        %647 = vmatprep.mubr.f32.mxu0 0.0
        %648 = vmatmul.mubr.f32.gmra.mrb[0].mxu0 %v530
        %v649 = vpop.f32.mrb[0].mxu0
        %v650 = vadd.f32 0.0, %v649
        %v651 = vpop.f32.mrb[0].mxu0
        %652 = vmatprep.mubr.f32.mxu0 0.0
        %653 = vmatmul.mubr.f32.gmra.mrb[0].mxu0 %v531
        %v654 = vpop.f32.mrb[0].mxu0
        %v655 = vadd.f32 0.0, %v654
        %v656 = vpop.f32.mrb[0].mxu0
        %657 = vmatprep.mubr.f32.mxu0 0.0
        %658 = vmatmul.mubr.f32.gmra.mrb[0].mxu0 %v532
        %v659 = vpop.f32.mrb[0].mxu0
        %v660 = vadd.f32 0.0, %v659
        %v661 = vpop.f32.mrb[0].mxu0
        %662 = vmatprep.mubr.f32.mxu0 0.0
        %663 = vmatmul.mubr.f32.gmra.mrb[0].mxu0 %v533
        %v664 = vpop.f32.mrb[0].mxu0
        %v665 = vadd.f32 0.0, %v664
        %v666 = vpop.f32.mrb[0].mxu0
        %667 = vmatprep.mubr.f32.mxu0 0.0
        %668 = vmatmul.mubr.f32.gmra.mrb[0].mxu0 %v534
        %v669 = vpop.f32.mrb[0].mxu0
        %v670 = vadd.f32 0.0, %v669
        %v671 = vpop.f32.mrb[0].mxu0
        %672 = vmatprep.mubr.f32.mxu0 0.0
        %673 = vmatmul.mubr.f32.gmra.mrb[0].mxu0 %v535
        %v674 = vpop.f32.mrb[0].mxu0
        %v675 = vadd.f32 0.0, %v674
        %v676 = vpop.f32.mrb[0].mxu0
        %677 = vmatprep.mubr.f32.mxu0 0.0
        %678 = vmatmul.mubr.f32.gmra.mrb[0].mxu0 %v536
        %v679 = vpop.f32.mrb[0].mxu0
        %v680 = vadd.f32 0.0, %v679
        %v681 = vpop.f32.mrb[0].mxu0
        %682 = vmatprep.mubr.f32.mxu0 0.0
        %683 = vmatmul.mubr.f32.gmra.mrb[0].mxu0 %v537
        %v684 = vpop.f32.mrb[0].mxu0
        %v685 = vadd.f32 0.0, %v684
        %v686 = vpop.f32.mrb[0].mxu0
        %687 = vmatprep.mubr.f32.mxu0 0.0
        %688 = vmatmul.mubr.f32.gmra.mrb[0].mxu0 %v538
        %v689 = vpop.f32.mrb[0].mxu0
        %v690 = vadd.f32 0.0, %v689
        %v691 = vpop.f32.mrb[0].mxu0
        %692 = vmatprep.mubr.f32.mxu0 0.0
        %693 = vmatmul.mubr.f32.gmra.mrb[0].mxu0 %v539
        %v694 = vpop.f32.mrb[0].mxu0
        %v695 = vadd.f32 0.0, %v694
        %v696 = vpop.f32.mrb[0].mxu0
        %697 = vmatprep.mubr.f32.mxu0 0.0
        %698 = vmatmul.mubr.f32.gmra.mrb[0].mxu0 %v540
        %v699 = vpop.f32.mrb[0].mxu0
        %v700 = vadd.f32 0.0, %v699
        %v701 = vpop.f32.mrb[0].mxu0
        %702 = vmatprep.mubr.f32.mxu0 0.0
        %703 = vmatmul.mubr.f32.gmra.mrb[0].mxu0 %v541
        %v704 = vpop.f32.mrb[0].mxu0
        %v705 = vadd.f32 0.0, %v704
        %v706 = vpop.f32.mrb[0].mxu0
        %707 = vmatprep.mubr.f32.mxu0 0.0
        %708 = vmatmul.mubr.f32.gmra.mrb[0].mxu0 %v542
        %v709 = vpop.f32.mrb[0].mxu0
        %v710 = vadd.f32 0.0, %v709
        %v711 = vpop.f32.mrb[0].mxu0
        %712 = vmatprep.mubr.f32.mxu0 0.0
        %713 = vmatmul.mubr.f32.gmra.mrb[0].mxu0 %v543
        %v714 = vpop.f32.mrb[0].mxu0
        %v715 = vadd.f32 0.0, %v714
        %v716 = vpop.f32.mrb[0].mxu0
        %717 = vmatprep.mubr.f32.mxu0 0.0
        %718 = vmatmul.mubr.f32.gmra.mrb[0].mxu0 %v544
        %v719 = vpop.f32.mrb[0].mxu0
        %v720 = vadd.f32 0.0, %v719
        %v721 = vpop.f32.mrb[0].mxu0
        %722 = vdwg.mxu0
        %v723 = vadd.f32 %v562, %v645
        %v724 = vadd.f32 %v563, %v650
        %v725 = vadd.f32 %v564, %v655
        %v726 = vadd.f32 %v565, %v660
        %v727 = vadd.f32 %v566, %v665
        %v728 = vadd.f32 %v567, %v670
        %v729 = vadd.f32 %v568, %v675
        %v730 = vadd.f32 %v569, %v680
        %v731 = vadd.f32 %v570, %v685
        %v732 = vadd.f32 %v571, %v690
        %v733 = vadd.f32 %v572, %v695
        %v734 = vadd.f32 %v573, %v700
        %v735 = vadd.f32 %v574, %v705
        %v736 = vadd.f32 %v575, %v710
        %v737 = vadd.f32 %v576, %v715
        %v738 = vadd.f32 %v577, %v720
        %vm739 = vcmask 785408
        %740 = vst.msk [vmem:[#allocation2] sm:$0xff] %vm739, %v723
        %741 = vst.msk [vmem:[#allocation2 + $0x8] sm:$0xff] %vm739, %v724
        %742 = vst.msk [vmem:[#allocation2 + $0x10] sm:$0xff] %vm739, %v725
        %743 = vst.msk [vmem:[#allocation2 + $0x18] sm:$0xff] %vm739, %v726
        %744 = vst.msk [vmem:[#allocation2 + $0x20] sm:$0xff] %vm739, %v727
        %745 = vst.msk [vmem:[#allocation2 + $0x28] sm:$0xff] %vm739, %v728
        %746 = vst.msk [vmem:[#allocation2 + $0x30] sm:$0xff] %vm739, %v729
        %747 = vst.msk [vmem:[#allocation2 + $0x38] sm:$0xff] %vm739, %v730
        %748 = vst.msk [vmem:[#allocation2 + $0x40] sm:$0xff] %vm739, %v731
        %749 = vst.msk [vmem:[#allocation2 + $0x48] sm:$0xff] %vm739, %v732
        %750 = vst.msk [vmem:[#allocation2 + $0x50] sm:$0xff] %vm739, %v733
        %751 = vst.msk [vmem:[#allocation2 + $0x58] sm:$0xff] %vm739, %v734
        %752 = vst.msk [vmem:[#allocation2 + $0x60] sm:$0xff] %vm739, %v735
        %753 = vst.msk [vmem:[#allocation2 + $0x68] sm:$0xff] %vm739, %v736
        %754 = vst.msk [vmem:[#allocation2 + $0x70] sm:$0xff] %vm739, %v737
        %755 = vst.msk [vmem:[#allocation2 + $0x78] sm:$0xff] %vm739, %v738
        %v756 = vld [vmem:[#allocation3] sm:$0xff]
        %v757 = vld [vmem:[#allocation3 + $0x8] sm:$0xff]
        %v758 = vld [vmem:[#allocation3 + $0x10] sm:$0xff]
        %v759 = vld [vmem:[#allocation3 + $0x18] sm:$0xff]
        %v760 = vld [vmem:[#allocation3 + $0x20] sm:$0xff]
        %v761 = vld [vmem:[#allocation3 + $0x28] sm:$0xff]
        %v762 = vld [vmem:[#allocation3 + $0x30] sm:$0xff]
        %v763 = vld [vmem:[#allocation3 + $0x38] sm:$0xff]
        %v764 = vld [vmem:[#allocation3 + $0x40] sm:$0xff]
        %v765 = vld [vmem:[#allocation3 + $0x48] sm:$0xff]
        %v766 = vld [vmem:[#allocation3 + $0x50] sm:$0xff]
        %v767 = vld [vmem:[#allocation3 + $0x58] sm:$0xff]
        %v768 = vld [vmem:[#allocation3 + $0x60] sm:$0xff]
        %v769 = vld [vmem:[#allocation3 + $0x68] sm:$0xff]
        %v770 = vld [vmem:[#allocation3 + $0x70] sm:$0xff]
        %v771 = vld [vmem:[#allocation3 + $0x78] sm:$0xff]
        %v772 = vmul.f32 %v529, %v529
        %v773 = vmul.f32 %v530, %v530
        %v774 = vmul.f32 %v531, %v531
        %v775 = vmul.f32 %v532, %v532
        %v776 = vmul.f32 %v533, %v533
        %v777 = vmul.f32 %v534, %v534
        %v778 = vmul.f32 %v535, %v535
        %v779 = vmul.f32 %v536, %v536
        %v780 = vmul.f32 %v537, %v537
        %v781 = vmul.f32 %v538, %v538
        %v782 = vmul.f32 %v539, %v539
        %v783 = vmul.f32 %v540, %v540
        %v784 = vmul.f32 %v541, %v541
        %v785 = vmul.f32 %v542, %v542
        %v786 = vmul.f32 %v543, %v543
        %v787 = vmul.f32 %v544, %v544
        %v789 = vlaneseq
        %v790 = vshrl.u32 %v789, 7
        %v791 = vsub.s32 0, %v790
        %v792 = vrot.slane %v561, %v791
        %v794 = vmul.f32 %v772, %v792
        %v795 = vmul.f32 %v773, %v792
        %v796 = vmul.f32 %v774, %v792
        %v797 = vmul.f32 %v775, %v792
        %v798 = vmul.f32 %v776, %v792
        %v799 = vmul.f32 %v777, %v792
        %v800 = vmul.f32 %v778, %v792
        %v801 = vmul.f32 %v779, %v792
        %v802 = vmul.f32 %v780, %v792
        %v803 = vmul.f32 %v781, %v792
        %v804 = vmul.f32 %v782, %v792
        %v805 = vmul.f32 %v783, %v792
        %v806 = vmul.f32 %v784, %v792
        %v807 = vmul.f32 %v785, %v792
        %v808 = vmul.f32 %v786, %v792
        %v809 = vmul.f32 %v787, %v792
        %810 = vadd.xlane.f32.xlu0 %v794
        %v811 = vpop.xlane.xlu0 %810
        %812 = vadd.xlane.f32.xlu0 %v795
        %v813 = vpop.xlane.xlu0 %812
        %814 = vadd.xlane.f32.xlu0 %v796
        %v815 = vpop.xlane.xlu0 %814
        %816 = vadd.xlane.f32.xlu0 %v797
        %v817 = vpop.xlane.xlu0 %816
        %818 = vadd.xlane.f32.xlu0 %v798
        %v819 = vpop.xlane.xlu0 %818
        %820 = vadd.xlane.f32.xlu0 %v799
        %v821 = vpop.xlane.xlu0 %820
        %822 = vadd.xlane.f32.xlu0 %v800
        %v823 = vpop.xlane.xlu0 %822
        %824 = vadd.xlane.f32.xlu0 %v801
        %v825 = vpop.xlane.xlu0 %824
        %826 = vadd.xlane.f32.xlu0 %v802
        %v827 = vpop.xlane.xlu0 %826
        %828 = vadd.xlane.f32.xlu0 %v803
        %v829 = vpop.xlane.xlu0 %828
        %830 = vadd.xlane.f32.xlu0 %v804
        %v831 = vpop.xlane.xlu0 %830
        %832 = vadd.xlane.f32.xlu0 %v805
        %v833 = vpop.xlane.xlu0 %832
        %834 = vadd.xlane.f32.xlu0 %v806
        %v835 = vpop.xlane.xlu0 %834
        %836 = vadd.xlane.f32.xlu0 %v807
        %v837 = vpop.xlane.xlu0 %836
        %838 = vadd.xlane.f32.xlu0 %v808
        %v839 = vpop.xlane.xlu0 %838
        %840 = vadd.xlane.f32.xlu0 %v809
        %v841 = vpop.xlane.xlu0 %840
        %v842 = vadd.f32 %v756, %v811
        %v843 = vadd.f32 %v757, %v813
        %v844 = vadd.f32 %v758, %v815
        %v845 = vadd.f32 %v759, %v817
        %v846 = vadd.f32 %v760, %v819
        %v847 = vadd.f32 %v761, %v821
        %v848 = vadd.f32 %v762, %v823
        %v849 = vadd.f32 %v763, %v825
        %v850 = vadd.f32 %v764, %v827
        %v851 = vadd.f32 %v765, %v829
        %v852 = vadd.f32 %v766, %v831
        %v853 = vadd.f32 %v767, %v833
        %v854 = vadd.f32 %v768, %v835
        %v855 = vadd.f32 %v769, %v837
        %v856 = vadd.f32 %v770, %v839
        %v857 = vadd.f32 %v771, %v841
        %vm858 = vcmask 7168
        %859 = vst.msk [vmem:[#allocation3] sm:$0xff] %vm858, %v842
        %860 = vst.msk [vmem:[#allocation3 + $0x8] sm:$0xff] %vm858, %v843
        %861 = vst.msk [vmem:[#allocation3 + $0x10] sm:$0xff] %vm858, %v844
        %862 = vst.msk [vmem:[#allocation3 + $0x18] sm:$0xff] %vm858, %v845
        %863 = vst.msk [vmem:[#allocation3 + $0x20] sm:$0xff] %vm858, %v846
        %864 = vst.msk [vmem:[#allocation3 + $0x28] sm:$0xff] %vm858, %v847
        %865 = vst.msk [vmem:[#allocation3 + $0x30] sm:$0xff] %vm858, %v848
        %866 = vst.msk [vmem:[#allocation3 + $0x38] sm:$0xff] %vm858, %v849
        %867 = vst.msk [vmem:[#allocation3 + $0x40] sm:$0xff] %vm858, %v850
        %868 = vst.msk [vmem:[#allocation3 + $0x48] sm:$0xff] %vm858, %v851
        %869 = vst.msk [vmem:[#allocation3 + $0x50] sm:$0xff] %vm858, %v852
        %870 = vst.msk [vmem:[#allocation3 + $0x58] sm:$0xff] %vm858, %v853
        %871 = vst.msk [vmem:[#allocation3 + $0x60] sm:$0xff] %vm858, %v854
        %872 = vst.msk [vmem:[#allocation3 + $0x68] sm:$0xff] %vm858, %v855
        %873 = vst.msk [vmem:[#allocation3 + $0x70] sm:$0xff] %vm858, %v856
        %874 = vst.msk [vmem:[#allocation3 + $0x78] sm:$0xff] %vm858, %v857
        %p875 = scmp.eq.s32.totalorder %s25, 1
        // Predicated region
        $region99: #{tpu_custom_call.1} parent=85 // pred_check
          %p876 = pneg %p875
        $region100: #{tpu_custom_call.1} parent=85 // pred_check_branch
          %878 = sbr.rel (%p876) target = $region102
        $region101: #{tpu_custom_call.1} parent=85 // pred_region
          %v879 = vld [vmem:[%s473] sm:$0xff]
          %v880 = vld [vmem:[%s473 + $0x8] sm:$0xff]
          %v881 = vld [vmem:[%s473 + $0x10] sm:$0xff]
          %v882 = vld [vmem:[%s473 + $0x18] sm:$0xff]
          %v883 = vld [vmem:[%s473 + $0x20] sm:$0xff]
          %v884 = vld [vmem:[%s473 + $0x28] sm:$0xff]
          %v885 = vld [vmem:[%s473 + $0x30] sm:$0xff]
          %v886 = vld [vmem:[%s473 + $0x38] sm:$0xff]
          %v887 = vld [vmem:[%s473 + $0x40] sm:$0xff]
          %v888 = vld [vmem:[%s473 + $0x48] sm:$0xff]
          %v889 = vld [vmem:[%s473 + $0x50] sm:$0xff]
          %v890 = vld [vmem:[%s473 + $0x58] sm:$0xff]
          %v891 = vld [vmem:[%s473 + $0x60] sm:$0xff]
          %v892 = vld [vmem:[%s473 + $0x68] sm:$0xff]
          %v893 = vld [vmem:[%s473 + $0x70] sm:$0xff]
          %v894 = vld [vmem:[%s473 + $0x78] sm:$0xff]
          %v895 = vld [vmem:[%s3] sm:$0xff]
          %v896 = vld [vmem:[%s3 + $0x8] sm:$0xff]
          %v897 = vld [vmem:[%s3 + $0x10] sm:$0xff]
          %v898 = vld [vmem:[%s3 + $0x18] sm:$0xff]
          %v899 = vld [vmem:[%s3 + $0x20] sm:$0xff]
          %v900 = vld [vmem:[%s3 + $0x28] sm:$0xff]
          %v901 = vld [vmem:[%s3 + $0x30] sm:$0xff]
          %v902 = vld [vmem:[%s3 + $0x38] sm:$0xff]
          %v903 = vld [vmem:[%s3 + $0x40] sm:$0xff]
          %v904 = vld [vmem:[%s3 + $0x48] sm:$0xff]
          %v905 = vld [vmem:[%s3 + $0x50] sm:$0xff]
          %v906 = vld [vmem:[%s3 + $0x58] sm:$0xff]
          %v907 = vld [vmem:[%s5] sm:$0x1]
          %v908 = vld [vmem:[%s482] sm:$0xff]
          %v909 = vld [vmem:[%s482 + $0x8] sm:$0xff]
          %v910 = vld [vmem:[%s482 + $0x10] sm:$0xff]
          %v911 = vld [vmem:[%s482 + $0x18] sm:$0xff]
          %v912 = vld [vmem:[%s482 + $0x20] sm:$0xff]
          %v913 = vld [vmem:[%s482 + $0x28] sm:$0xff]
          %v914 = vld [vmem:[%s482 + $0x30] sm:$0xff]
          %v915 = vld [vmem:[%s482 + $0x38] sm:$0xff]
          %v916 = vld [vmem:[%s482 + $0x40] sm:$0xff]
          %v917 = vld [vmem:[%s482 + $0x48] sm:$0xff]
          %v918 = vld [vmem:[%s482 + $0x50] sm:$0xff]
          %v919 = vld [vmem:[%s482 + $0x58] sm:$0xff]
          %v920 = vld [vmem:[%s482 + $0x60] sm:$0xff]
          %v921 = vld [vmem:[%s482 + $0x68] sm:$0xff]
          %v922 = vld [vmem:[%s482 + $0x70] sm:$0xff]
          %v923 = vld [vmem:[%s482 + $0x78] sm:$0xff]
          %v924 = vld [vmem:[%s7] sm:$0xff]
          %v925 = vld [vmem:[%s7 + $0x8] sm:$0xff]
          %v926 = vld [vmem:[%s7 + $0x10] sm:$0xff]
          %v927 = vld [vmem:[%s7 + $0x18] sm:$0xff]
          %v928 = vld [vmem:[%s7 + $0x20] sm:$0xff]
          %v929 = vld [vmem:[%s7 + $0x28] sm:$0xff]
          %v930 = vld [vmem:[%s7 + $0x30] sm:$0xff]
          %v931 = vld [vmem:[%s7 + $0x38] sm:$0xff]
          %v932 = vld [vmem:[%s7 + $0x40] sm:$0xff]
          %v933 = vld [vmem:[%s7 + $0x48] sm:$0xff]
          %v934 = vld [vmem:[%s7 + $0x50] sm:$0xff]
          %v935 = vld [vmem:[%s7 + $0x58] sm:$0xff]
          %v937 = vsel %vm739, %v879, 0
          %v940 = vsel %vm739, %v880, 0
          %v943 = vsel %vm739, %v881, 0
          %v946 = vsel %vm739, %v882, 0
          %v949 = vsel %vm739, %v883, 0
          %v952 = vsel %vm739, %v884, 0
          %v955 = vsel %vm739, %v885, 0
          %v958 = vsel %vm739, %v886, 0
          %v961 = vsel %vm739, %v887, 0
          %v964 = vsel %vm739, %v888, 0
          %v967 = vsel %vm739, %v889, 0
          %v970 = vsel %vm739, %v890, 0
          %v973 = vsel %vm739, %v891, 0
          %v976 = vsel %vm739, %v892, 0
          %v979 = vsel %vm739, %v893, 0
          %v982 = vsel %vm739, %v894, 0
          %984 = vmatprep.subr.mxu0 0.0
          %985 = vmatpush1.msra.mxu0 %v895
          %986 = vmatprep.subr.mxu0 0.0
          %987 = vmatpush1.msra.mxu0 %v896
          %988 = vmatprep.subr.mxu0 0.0
          %989 = vmatpush1.msra.mxu0 %v897
          %990 = vmatprep.subr.mxu0 0.0
          %991 = vmatpush1.msra.mxu0 %v898
          %992 = vmatprep.subr.mxu0 0.0
          %993 = vmatpush1.msra.mxu0 %v899
          %994 = vmatprep.subr.mxu0 0.0
          %995 = vmatpush1.msra.mxu0 %v900
          %996 = vmatprep.subr.mxu0 0.0
          %997 = vmatpush1.msra.mxu0 %v901
          %998 = vmatprep.subr.mxu0 0.0
          %999 = vmatpush1.msra.mxu0 %v902
          %1000 = vmatprep.subr.mxu0 0.0
          %1001 = vmatpush1.msra.mxu0 %v903
          %1002 = vmatprep.subr.mxu0 0.0
          %1003 = vmatpush1.msra.mxu0 %v904
          %1004 = vmatprep.subr.mxu0 0.0
          %1005 = vmatpush1.msra.mxu0 %v905
          %1006 = vmatprep.subr.mxu0 0.0
          %1007 = vmatpush1.msra.mxu0 %v906
          %1008 = vmatprep.subr.mxu0 0.0
          %1009 = vmatpush1.msra.mxu0 0.0
          %1010 = vmatprep.subr.mxu0 0.0
          %1011 = vmatpush1.msra.mxu0 0.0
          %1012 = vmatprep.subr.mxu0 0.0
          %1013 = vmatpush1.msra.mxu0 0.0
          %1014 = vmatprep.subr.mxu0 0.0
          %1015 = vmatpush1.msra.mxu0 0.0
          %1016 = vmatprep.subr.mxu0 0.0
          %1017 = vmatpush1.msra.mxu0 0.0
          %1018 = vmatprep.subr.mxu0 0.0
          %1019 = vmatpush1.msra.mxu0 0.0
          %1020 = vmatprep.subr.mxu0 0.0
          %1021 = vmatpush1.msra.mxu0 0.0
          %1022 = vmatprep.subr.mxu0 0.0
          %1023 = vmatpush1.msra.mxu0 0.0
          %1024 = vmatprep.subr.mxu0 0.0
          %1025 = vmatpush1.msra.mxu0 0.0
          %1026 = vmatprep.subr.mxu0 0.0
          %1027 = vmatpush1.msra.mxu0 0.0
          %1028 = vmatprep.subr.mxu0 0.0
          %1029 = vmatpush1.msra.mxu0 0.0
          %1030 = vmatprep.subr.mxu0 0.0
          %1031 = vmatpush1.msra.mxu0 0.0
          %1032 = vmatprep.subr.mxu0 0.0
          %1033 = vmatpush1.msra.mxu0 0.0
          %1034 = vmatprep.subr.mxu0 0.0
          %1035 = vmatpush1.msra.mxu0 0.0
          %1036 = vmatprep.subr.mxu0 0.0
          %1037 = vmatpush1.msra.mxu0 0.0
          %1038 = vmatprep.subr.mxu0 0.0
          %1039 = vmatpush1.msra.mxu0 0.0
          %1040 = vmatprep.subr.mxu0 0.0
          %1041 = vmatpush1.msra.mxu0 0.0
          %1042 = vmatprep.subr.mxu0 0.0
          %1043 = vmatpush1.msra.mxu0 0.0
          %1044 = vmatprep.subr.mxu0 0.0
          %1045 = vmatpush1.msra.mxu0 0.0
          %1046 = vmatprep.subr.mxu0 0.0
          %1047 = vmatpush1.msra.mxu0 0.0
          %1048 = vmatprep.mubr.f32.mxu0 0.0
          %1049 = vmatmul.mubr.f32.gmra.mrb[0].mxu0 %v937
          %v1050 = vpop.f32.mrb[0].mxu0
          %v1051 = vadd.f32 0.0, %v1050
          %v1052 = vpop.f32.mrb[0].mxu0
          %1053 = vmatprep.mubr.f32.mxu0 0.0
          %1054 = vmatmul.mubr.f32.gmra.mrb[0].mxu0 %v940
          %v1055 = vpop.f32.mrb[0].mxu0
          %v1056 = vadd.f32 0.0, %v1055
          %v1057 = vpop.f32.mrb[0].mxu0
          %1058 = vmatprep.mubr.f32.mxu0 0.0
          %1059 = vmatmul.mubr.f32.gmra.mrb[0].mxu0 %v943
          %v1060 = vpop.f32.mrb[0].mxu0
          %v1061 = vadd.f32 0.0, %v1060
          %v1062 = vpop.f32.mrb[0].mxu0
          %1063 = vmatprep.mubr.f32.mxu0 0.0
          %1064 = vmatmul.mubr.f32.gmra.mrb[0].mxu0 %v946
          %v1065 = vpop.f32.mrb[0].mxu0
          %v1066 = vadd.f32 0.0, %v1065
          %v1067 = vpop.f32.mrb[0].mxu0
          %1068 = vmatprep.mubr.f32.mxu0 0.0
          %1069 = vmatmul.mubr.f32.gmra.mrb[0].mxu0 %v949
          %v1070 = vpop.f32.mrb[0].mxu0
          %v1071 = vadd.f32 0.0, %v1070
          %v1072 = vpop.f32.mrb[0].mxu0
          %1073 = vmatprep.mubr.f32.mxu0 0.0
          %1074 = vmatmul.mubr.f32.gmra.mrb[0].mxu0 %v952
          %v1075 = vpop.f32.mrb[0].mxu0
          %v1076 = vadd.f32 0.0, %v1075
          %v1077 = vpop.f32.mrb[0].mxu0
          %1078 = vmatprep.mubr.f32.mxu0 0.0
          %1079 = vmatmul.mubr.f32.gmra.mrb[0].mxu0 %v955
          %v1080 = vpop.f32.mrb[0].mxu0
          %v1081 = vadd.f32 0.0, %v1080
          %v1082 = vpop.f32.mrb[0].mxu0
          %1083 = vmatprep.mubr.f32.mxu0 0.0
          %1084 = vmatmul.mubr.f32.gmra.mrb[0].mxu0 %v958
          %v1085 = vpop.f32.mrb[0].mxu0
          %v1086 = vadd.f32 0.0, %v1085
          %v1087 = vpop.f32.mrb[0].mxu0
          %1088 = vmatprep.mubr.f32.mxu0 0.0
          %1089 = vmatmul.mubr.f32.gmra.mrb[0].mxu0 %v961
          %v1090 = vpop.f32.mrb[0].mxu0
          %v1091 = vadd.f32 0.0, %v1090
          %v1092 = vpop.f32.mrb[0].mxu0
          %1093 = vmatprep.mubr.f32.mxu0 0.0
          %1094 = vmatmul.mubr.f32.gmra.mrb[0].mxu0 %v964
          %v1095 = vpop.f32.mrb[0].mxu0
          %v1096 = vadd.f32 0.0, %v1095
          %v1097 = vpop.f32.mrb[0].mxu0
          %1098 = vmatprep.mubr.f32.mxu0 0.0
          %1099 = vmatmul.mubr.f32.gmra.mrb[0].mxu0 %v967
          %v1100 = vpop.f32.mrb[0].mxu0
          %v1101 = vadd.f32 0.0, %v1100
          %v1102 = vpop.f32.mrb[0].mxu0
          %1103 = vmatprep.mubr.f32.mxu0 0.0
          %1104 = vmatmul.mubr.f32.gmra.mrb[0].mxu0 %v970
          %v1105 = vpop.f32.mrb[0].mxu0
          %v1106 = vadd.f32 0.0, %v1105
          %v1107 = vpop.f32.mrb[0].mxu0
          %1108 = vmatprep.mubr.f32.mxu0 0.0
          %1109 = vmatmul.mubr.f32.gmra.mrb[0].mxu0 %v973
          %v1110 = vpop.f32.mrb[0].mxu0
          %v1111 = vadd.f32 0.0, %v1110
          %v1112 = vpop.f32.mrb[0].mxu0
          %1113 = vmatprep.mubr.f32.mxu0 0.0
          %1114 = vmatmul.mubr.f32.gmra.mrb[0].mxu0 %v976
          %v1115 = vpop.f32.mrb[0].mxu0
          %v1116 = vadd.f32 0.0, %v1115
          %v1117 = vpop.f32.mrb[0].mxu0
          %1118 = vmatprep.mubr.f32.mxu0 0.0
          %1119 = vmatmul.mubr.f32.gmra.mrb[0].mxu0 %v979
          %v1120 = vpop.f32.mrb[0].mxu0
          %v1121 = vadd.f32 0.0, %v1120
          %v1122 = vpop.f32.mrb[0].mxu0
          %1123 = vmatprep.mubr.f32.mxu0 0.0
          %1124 = vmatmul.mubr.f32.gmra.mrb[0].mxu0 %v982
          %v1125 = vpop.f32.mrb[0].mxu0
          %v1126 = vadd.f32 0.0, %v1125
          %v1127 = vpop.f32.mrb[0].mxu0
          %1128 = vdwg.mxu0
          %v1129 = vld [vmem:[#allocation2] sm:$0xff]
          %v1130 = vld [vmem:[#allocation2 + $0x8] sm:$0xff]
          %v1131 = vld [vmem:[#allocation2 + $0x10] sm:$0xff]
          %v1132 = vld [vmem:[#allocation2 + $0x18] sm:$0xff]
          %v1133 = vld [vmem:[#allocation2 + $0x20] sm:$0xff]
          %v1134 = vld [vmem:[#allocation2 + $0x28] sm:$0xff]
          %v1135 = vld [vmem:[#allocation2 + $0x30] sm:$0xff]
          %v1136 = vld [vmem:[#allocation2 + $0x38] sm:$0xff]
          %v1137 = vld [vmem:[#allocation2 + $0x40] sm:$0xff]
          %v1138 = vld [vmem:[#allocation2 + $0x48] sm:$0xff]
          %v1139 = vld [vmem:[#allocation2 + $0x50] sm:$0xff]
          %v1140 = vld [vmem:[#allocation2 + $0x58] sm:$0xff]
          %v1141 = vld [vmem:[#allocation2 + $0x60] sm:$0xff]
          %v1142 = vld [vmem:[#allocation2 + $0x68] sm:$0xff]
          %v1143 = vld [vmem:[#allocation2 + $0x70] sm:$0xff]
          %v1144 = vld [vmem:[#allocation2 + $0x78] sm:$0xff]
          %v1145 = vmul.f32 %v1129, %v1051
          %v1146 = vmul.f32 %v1130, %v1056
          %v1147 = vmul.f32 %v1131, %v1061
          %v1148 = vmul.f32 %v1132, %v1066
          %v1149 = vmul.f32 %v1133, %v1071
          %v1150 = vmul.f32 %v1134, %v1076
          %v1151 = vmul.f32 %v1135, %v1081
          %v1152 = vmul.f32 %v1136, %v1086
          %v1153 = vmul.f32 %v1137, %v1091
          %v1154 = vmul.f32 %v1138, %v1096
          %v1155 = vmul.f32 %v1139, %v1101
          %v1156 = vmul.f32 %v1140, %v1106
          %v1157 = vmul.f32 %v1141, %v1111
          %v1158 = vmul.f32 %v1142, %v1116
          %v1159 = vmul.f32 %v1143, %v1121
          %v1160 = vmul.f32 %v1144, %v1126
          %v1161 = vsel %vm739, %v1145, 0.0
          %v1162 = vsel %vm739, %v1146, 0.0
          %v1163 = vadd.f32 %v1161, %v1162
          %v1164 = vsel %vm739, %v1147, 0.0
          %v1165 = vadd.f32 %v1163, %v1164
          %v1166 = vsel %vm739, %v1148, 0.0
          %v1167 = vadd.f32 %v1165, %v1166
          %v1168 = vsel %vm739, %v1149, 0.0
          %v1169 = vadd.f32 %v1167, %v1168
          %v1170 = vsel %vm739, %v1150, 0.0
          %v1171 = vadd.f32 %v1169, %v1170
          %v1172 = vsel %vm739, %v1151, 0.0
          %v1173 = vadd.f32 %v1171, %v1172
          %v1174 = vsel %vm739, %v1152, 0.0
          %v1175 = vadd.f32 %v1173, %v1174
          %v1176 = vsel %vm739, %v1153, 0.0
          %v1177 = vadd.f32 %v1175, %v1176
          %v1178 = vsel %vm739, %v1154, 0.0
          %v1179 = vadd.f32 %v1177, %v1178
          %v1180 = vsel %vm739, %v1155, 0.0
          %v1181 = vadd.f32 %v1179, %v1180
          %v1182 = vsel %vm739, %v1156, 0.0
          %v1183 = vadd.f32 %v1181, %v1182
          %v1184 = vsel %vm739, %v1157, 0.0
          %v1185 = vadd.f32 %v1183, %v1184
          %v1186 = vsel %vm739, %v1158, 0.0
          %v1187 = vadd.f32 %v1185, %v1186
          %v1188 = vsel %vm739, %v1159, 0.0
          %v1189 = vadd.f32 %v1187, %v1188
          %v1190 = vsel %vm739, %v1160, 0.0
          %v1191 = vadd.f32 %v1189, %v1190
          %1192 = vadd.xlane.f32.xlu0 %v1191
          %v1193 = vpop.xlane.xlu0 %1192
          %v1194 = vrot.slane %v1193, 4
          %v1195 = vadd.f32 %v1193, %v1194
          %v1196 = vrot.slane %v1195, 2
          %v1197 = vadd.f32 %v1195, %v1196
          %v1198 = vrot.slane %v1197, 1
          %v1199 = vadd.f32 %v1197, %v1198
          %s1200 = vtos %v1199
          %v1201 = vsel %vm739, %v879, 0.0
          %1202 = vadd.xlane.f32.xlu0 %v1201
          %v1203 = vpop.xlane.xlu0 %1202
          %v1204 = vsel %vm739, %v880, 0.0
          %1205 = vadd.xlane.f32.xlu0 %v1204
          %v1206 = vpop.xlane.xlu0 %1205
          %v1207 = vsel %vm739, %v881, 0.0
          %1208 = vadd.xlane.f32.xlu0 %v1207
          %v1209 = vpop.xlane.xlu0 %1208
          %v1210 = vsel %vm739, %v882, 0.0
          %1211 = vadd.xlane.f32.xlu0 %v1210
          %v1212 = vpop.xlane.xlu0 %1211
          %v1213 = vsel %vm739, %v883, 0.0
          %1214 = vadd.xlane.f32.xlu0 %v1213
          %v1215 = vpop.xlane.xlu0 %1214
          %v1216 = vsel %vm739, %v884, 0.0
          %1217 = vadd.xlane.f32.xlu0 %v1216
          %v1218 = vpop.xlane.xlu0 %1217
          %v1219 = vsel %vm739, %v885, 0.0
          %1220 = vadd.xlane.f32.xlu0 %v1219
          %v1221 = vpop.xlane.xlu0 %1220
          %v1222 = vsel %vm739, %v886, 0.0
          %1223 = vadd.xlane.f32.xlu0 %v1222
          %v1224 = vpop.xlane.xlu0 %1223
          %v1225 = vsel %vm739, %v887, 0.0
          %1226 = vadd.xlane.f32.xlu0 %v1225
          %v1227 = vpop.xlane.xlu0 %1226
          %v1228 = vsel %vm739, %v888, 0.0
          %1229 = vadd.xlane.f32.xlu0 %v1228
          %v1230 = vpop.xlane.xlu0 %1229
          %v1231 = vsel %vm739, %v889, 0.0
          %1232 = vadd.xlane.f32.xlu0 %v1231
          %v1233 = vpop.xlane.xlu0 %1232
          %v1234 = vsel %vm739, %v890, 0.0
          %1235 = vadd.xlane.f32.xlu0 %v1234
          %v1236 = vpop.xlane.xlu0 %1235
          %v1237 = vsel %vm739, %v891, 0.0
          %1238 = vadd.xlane.f32.xlu0 %v1237
          %v1239 = vpop.xlane.xlu0 %1238
          %v1240 = vsel %vm739, %v892, 0.0
          %1241 = vadd.xlane.f32.xlu0 %v1240
          %v1242 = vpop.xlane.xlu0 %1241
          %v1243 = vsel %vm739, %v893, 0.0
          %1244 = vadd.xlane.f32.xlu0 %v1243
          %v1245 = vpop.xlane.xlu0 %1244
          %v1246 = vsel %vm739, %v894, 0.0
          %1247 = vadd.xlane.f32.xlu0 %v1246
          %v1248 = vpop.xlane.xlu0 %1247
          %v1249 = vld [vmem:[#allocation3] sm:$0xff]
          %v1250 = vld [vmem:[#allocation3 + $0x8] sm:$0xff]
          %v1251 = vld [vmem:[#allocation3 + $0x10] sm:$0xff]
          %v1252 = vld [vmem:[#allocation3 + $0x18] sm:$0xff]
          %v1253 = vld [vmem:[#allocation3 + $0x20] sm:$0xff]
          %v1254 = vld [vmem:[#allocation3 + $0x28] sm:$0xff]
          %v1255 = vld [vmem:[#allocation3 + $0x30] sm:$0xff]
          %v1256 = vld [vmem:[#allocation3 + $0x38] sm:$0xff]
          %v1257 = vld [vmem:[#allocation3 + $0x40] sm:$0xff]
          %v1258 = vld [vmem:[#allocation3 + $0x48] sm:$0xff]
          %v1259 = vld [vmem:[#allocation3 + $0x50] sm:$0xff]
          %v1260 = vld [vmem:[#allocation3 + $0x58] sm:$0xff]
          %v1261 = vld [vmem:[#allocation3 + $0x60] sm:$0xff]
          %v1262 = vld [vmem:[#allocation3 + $0x68] sm:$0xff]
          %v1263 = vld [vmem:[#allocation3 + $0x70] sm:$0xff]
          %v1264 = vld [vmem:[#allocation3 + $0x78] sm:$0xff]
          %v1265 = vmul.f32 %v1249, %v1203
          %v1266 = vmul.f32 %v1250, %v1206
          %v1267 = vmul.f32 %v1251, %v1209
          %v1268 = vmul.f32 %v1252, %v1212
          %v1269 = vmul.f32 %v1253, %v1215
          %v1270 = vmul.f32 %v1254, %v1218
          %v1271 = vmul.f32 %v1255, %v1221
          %v1272 = vmul.f32 %v1256, %v1224
          %v1273 = vmul.f32 %v1257, %v1227
          %v1274 = vmul.f32 %v1258, %v1230
          %v1275 = vmul.f32 %v1259, %v1233
          %v1276 = vmul.f32 %v1260, %v1236
          %v1277 = vmul.f32 %v1261, %v1239
          %v1278 = vmul.f32 %v1262, %v1242
          %v1279 = vmul.f32 %v1263, %v1245
          %v1280 = vmul.f32 %v1264, %v1248
          %v1281 = vsel %vm858, %v1265, 0.0
          %v1282 = vsel %vm858, %v1266, 0.0
          %v1283 = vadd.f32 %v1281, %v1282
          %v1284 = vsel %vm858, %v1267, 0.0
          %v1285 = vadd.f32 %v1283, %v1284
          %v1286 = vsel %vm858, %v1268, 0.0
          %v1287 = vadd.f32 %v1285, %v1286
          %v1288 = vsel %vm858, %v1269, 0.0
          %v1289 = vadd.f32 %v1287, %v1288
          %v1290 = vsel %vm858, %v1270, 0.0
          %v1291 = vadd.f32 %v1289, %v1290
          %v1292 = vsel %vm858, %v1271, 0.0
          %v1293 = vadd.f32 %v1291, %v1292
          %v1294 = vsel %vm858, %v1272, 0.0
          %v1295 = vadd.f32 %v1293, %v1294
          %v1296 = vsel %vm858, %v1273, 0.0
          %v1297 = vadd.f32 %v1295, %v1296
          %v1298 = vsel %vm858, %v1274, 0.0
          %v1299 = vadd.f32 %v1297, %v1298
          %v1300 = vsel %vm858, %v1275, 0.0
          %v1301 = vadd.f32 %v1299, %v1300
          %v1302 = vsel %vm858, %v1276, 0.0
          %v1303 = vadd.f32 %v1301, %v1302
          %v1304 = vsel %vm858, %v1277, 0.0
          %v1305 = vadd.f32 %v1303, %v1304
          %v1306 = vsel %vm858, %v1278, 0.0
          %v1307 = vadd.f32 %v1305, %v1306
          %v1308 = vsel %vm858, %v1279, 0.0
          %v1309 = vadd.f32 %v1307, %v1308
          %v1310 = vsel %vm858, %v1280, 0.0
          %v1311 = vadd.f32 %v1309, %v1310
          %1312 = vadd.xlane.f32.xlu0 %v1311
          %v1313 = vpop.xlane.xlu0 %1312
          %v1314 = vrot.slane %v1313, 4
          %v1315 = vadd.f32 %v1313, %v1314
          %v1316 = vrot.slane %v1315, 2
          %v1317 = vadd.f32 %v1315, %v1316
          %v1318 = vrot.slane %v1317, 1
          %v1319 = vadd.f32 %v1317, %v1318
          %s1320 = vtos %v1319
          %v1321 = vsel %vm858, %v1203, 0.0
          %v1322 = vsel %vm858, %v1206, 0.0
          %v1323 = vadd.f32 %v1321, %v1322
          %v1324 = vsel %vm858, %v1209, 0.0
          %v1325 = vadd.f32 %v1323, %v1324
          %v1326 = vsel %vm858, %v1212, 0.0
          %v1327 = vadd.f32 %v1325, %v1326
          %v1328 = vsel %vm858, %v1215, 0.0
          %v1329 = vadd.f32 %v1327, %v1328
          %v1330 = vsel %vm858, %v1218, 0.0
          %v1331 = vadd.f32 %v1329, %v1330
          %v1332 = vsel %vm858, %v1221, 0.0
          %v1333 = vadd.f32 %v1331, %v1332
          %v1334 = vsel %vm858, %v1224, 0.0
          %v1335 = vadd.f32 %v1333, %v1334
          %v1336 = vsel %vm858, %v1227, 0.0
          %v1337 = vadd.f32 %v1335, %v1336
          %v1338 = vsel %vm858, %v1230, 0.0
          %v1339 = vadd.f32 %v1337, %v1338
          %v1340 = vsel %vm858, %v1233, 0.0
          %v1341 = vadd.f32 %v1339, %v1340
          %v1342 = vsel %vm858, %v1236, 0.0
          %v1343 = vadd.f32 %v1341, %v1342
          %v1344 = vsel %vm858, %v1239, 0.0
          %v1345 = vadd.f32 %v1343, %v1344
          %v1346 = vsel %vm858, %v1242, 0.0
          %v1347 = vadd.f32 %v1345, %v1346
          %v1348 = vsel %vm858, %v1245, 0.0
          %v1349 = vadd.f32 %v1347, %v1348
          %v1350 = vsel %vm858, %v1248, 0.0
          %v1351 = vadd.f32 %v1349, %v1350
          %1352 = vadd.xlane.f32.xlu0 %v1351
          %v1353 = vpop.xlane.xlu0 %1352
          %v1354 = vrot.slane %v1353, 4
          %v1355 = vadd.f32 %v1353, %v1354
          %v1356 = vrot.slane %v1355, 2
          %v1357 = vadd.f32 %v1355, %v1356
          %v1358 = vrot.slane %v1357, 1
          %v1359 = vadd.f32 %v1357, %v1358
          %s1360 = vtos %v1359
          %v1361 = vmul.f32 %v895, %v895
          %v1362 = vmul.f32 %v896, %v896
          %v1363 = vmul.f32 %v897, %v897
          %v1364 = vmul.f32 %v898, %v898
          %v1365 = vmul.f32 %v899, %v899
          %v1366 = vmul.f32 %v900, %v900
          %v1367 = vmul.f32 %v901, %v901
          %v1368 = vmul.f32 %v902, %v902
          %v1369 = vmul.f32 %v903, %v903
          %v1370 = vmul.f32 %v904, %v904
          %v1371 = vmul.f32 %v905, %v905
          %v1372 = vmul.f32 %v906, %v906
          %v1374 = vlaneseq
          %v1375 = vshrl.u32 %v1374, 7
          %v1376 = vsub.s32 0, %v1375
          %v1377 = vrot.slane %v907, %v1376
          %v1379 = vmul.f32 %v1361, %v1377
          %v1380 = vmul.f32 %v1362, %v1377
          %v1381 = vmul.f32 %v1363, %v1377
          %v1382 = vmul.f32 %v1364, %v1377
          %v1383 = vmul.f32 %v1365, %v1377
          %v1384 = vmul.f32 %v1366, %v1377
          %v1385 = vmul.f32 %v1367, %v1377
          %v1386 = vmul.f32 %v1368, %v1377
          %v1387 = vmul.f32 %v1369, %v1377
          %v1388 = vmul.f32 %v1370, %v1377
          %v1389 = vmul.f32 %v1371, %v1377
          %v1390 = vmul.f32 %v1372, %v1377
          %v1391 = vsel %vm739, %v1379, 0.0
          %1392 = vadd.xlane.f32.xlu0 %v1391
          %v1393 = vpop.xlane.xlu0 %1392
          %v1394 = vsel %vm739, %v1380, 0.0
          %1395 = vadd.xlane.f32.xlu0 %v1394
          %v1396 = vpop.xlane.xlu0 %1395
          %v1397 = vsel %vm739, %v1381, 0.0
          %1398 = vadd.xlane.f32.xlu0 %v1397
          %v1399 = vpop.xlane.xlu0 %1398
          %v1400 = vsel %vm739, %v1382, 0.0
          %1401 = vadd.xlane.f32.xlu0 %v1400
          %v1402 = vpop.xlane.xlu0 %1401
          %v1403 = vsel %vm739, %v1383, 0.0
          %1404 = vadd.xlane.f32.xlu0 %v1403
          %v1405 = vpop.xlane.xlu0 %1404
          %v1406 = vsel %vm739, %v1384, 0.0
          %1407 = vadd.xlane.f32.xlu0 %v1406
          %v1408 = vpop.xlane.xlu0 %1407
          %v1409 = vsel %vm739, %v1385, 0.0
          %1410 = vadd.xlane.f32.xlu0 %v1409
          %v1411 = vpop.xlane.xlu0 %1410
          %v1412 = vsel %vm739, %v1386, 0.0
          %1413 = vadd.xlane.f32.xlu0 %v1412
          %v1414 = vpop.xlane.xlu0 %1413
          %v1415 = vsel %vm739, %v1387, 0.0
          %1416 = vadd.xlane.f32.xlu0 %v1415
          %v1417 = vpop.xlane.xlu0 %1416
          %v1418 = vsel %vm739, %v1388, 0.0
          %1419 = vadd.xlane.f32.xlu0 %v1418
          %v1420 = vpop.xlane.xlu0 %1419
          %v1421 = vsel %vm739, %v1389, 0.0
          %1422 = vadd.xlane.f32.xlu0 %v1421
          %v1423 = vpop.xlane.xlu0 %1422
          %v1424 = vsel %vm739, %v1390, 0.0
          %1425 = vadd.xlane.f32.xlu0 %v1424
          %v1426 = vpop.xlane.xlu0 %1425
          %v1427 = vadd.f32 %v1201, %v1204
          %v1428 = vadd.f32 %v1427, %v1207
          %v1429 = vadd.f32 %v1428, %v1210
          %v1430 = vadd.f32 %v1429, %v1213
          %v1431 = vadd.f32 %v1430, %v1216
          %v1432 = vadd.f32 %v1431, %v1219
          %v1433 = vadd.f32 %v1432, %v1222
          %v1434 = vadd.f32 %v1433, %v1225
          %v1435 = vadd.f32 %v1434, %v1228
          %v1436 = vadd.f32 %v1435, %v1231
          %v1437 = vadd.f32 %v1436, %v1234
          %v1438 = vadd.f32 %v1437, %v1237
          %v1439 = vadd.f32 %v1438, %v1240
          %v1440 = vadd.f32 %v1439, %v1243
          %v1441 = vadd.f32 %v1440, %v1246
          %v1442 = vrot.slane %v1441, 4
          %v1443 = vadd.f32 %v1441, %v1442
          %v1444 = vrot.slane %v1443, 2
          %v1445 = vadd.f32 %v1443, %v1444
          %v1446 = vrot.slane %v1445, 1
          %v1447 = vadd.f32 %v1445, %v1446
          %v1449 = vsel %vm739, %v1447, 0
          %1451 = vmatprep.subr.mxu0 0.0
          %1452 = vmatpush1.msra.mxu0 %v1393
          %1453 = vmatprep.subr.mxu0 0.0
          %1454 = vmatpush1.msra.mxu0 %v1396
          %1455 = vmatprep.subr.mxu0 0.0
          %1456 = vmatpush1.msra.mxu0 %v1399
          %1457 = vmatprep.subr.mxu0 0.0
          %1458 = vmatpush1.msra.mxu0 %v1402
          %1459 = vmatprep.subr.mxu0 0.0
          %1460 = vmatpush1.msra.mxu0 %v1405
          %1461 = vmatprep.subr.mxu0 0.0
          %1462 = vmatpush1.msra.mxu0 %v1408
          %1463 = vmatprep.subr.mxu0 0.0
          %1464 = vmatpush1.msra.mxu0 %v1411
          %1465 = vmatprep.subr.mxu0 0.0
          %1466 = vmatpush1.msra.mxu0 %v1414
          %1467 = vmatprep.subr.mxu0 0.0
          %1468 = vmatpush1.msra.mxu0 %v1417
          %1469 = vmatprep.subr.mxu0 0.0
          %1470 = vmatpush1.msra.mxu0 %v1420
          %1471 = vmatprep.subr.mxu0 0.0
          %1472 = vmatpush1.msra.mxu0 %v1423
          %1473 = vmatprep.subr.mxu0 0.0
          %1474 = vmatpush1.msra.mxu0 %v1426
          %1475 = vmatprep.subr.mxu0 0.0
          %1476 = vmatpush1.msra.mxu0 0.0
          %1477 = vmatprep.subr.mxu0 0.0
          %1478 = vmatpush1.msra.mxu0 0.0
          %1479 = vmatprep.subr.mxu0 0.0
          %1480 = vmatpush1.msra.mxu0 0.0
          %1481 = vmatprep.subr.mxu0 0.0
          %1482 = vmatpush1.msra.mxu0 0.0
          %1483 = vmatprep.subr.mxu0 0.0
          %1484 = vmatpush1.msra.mxu0 0.0
          %1485 = vmatprep.subr.mxu0 0.0
          %1486 = vmatpush1.msra.mxu0 0.0
          %1487 = vmatprep.subr.mxu0 0.0
          %1488 = vmatpush1.msra.mxu0 0.0
          %1489 = vmatprep.subr.mxu0 0.0
          %1490 = vmatpush1.msra.mxu0 0.0
          %1491 = vmatprep.subr.mxu0 0.0
          %1492 = vmatpush1.msra.mxu0 0.0
          %1493 = vmatprep.subr.mxu0 0.0
          %1494 = vmatpush1.msra.mxu0 0.0
          %1495 = vmatprep.subr.mxu0 0.0
          %1496 = vmatpush1.msra.mxu0 0.0
          %1497 = vmatprep.subr.mxu0 0.0
          %1498 = vmatpush1.msra.mxu0 0.0
          %1499 = vmatprep.subr.mxu0 0.0
          %1500 = vmatpush1.msra.mxu0 0.0
          %1501 = vmatprep.subr.mxu0 0.0
          %1502 = vmatpush1.msra.mxu0 0.0
          %1503 = vmatprep.subr.mxu0 0.0
          %1504 = vmatpush1.msra.mxu0 0.0
          %1505 = vmatprep.subr.mxu0 0.0
          %1506 = vmatpush1.msra.mxu0 0.0
          %1507 = vmatprep.subr.mxu0 0.0
          %1508 = vmatpush1.msra.mxu0 0.0
          %1509 = vmatprep.subr.mxu0 0.0
          %1510 = vmatpush1.msra.mxu0 0.0
          %1511 = vmatprep.subr.mxu0 0.0
          %1512 = vmatpush1.msra.mxu0 0.0
          %1513 = vmatprep.subr.mxu0 0.0
          %1514 = vmatpush1.msra.mxu0 0.0
          %1515 = vmatprep.mubr.f32.mxu0 0.0
          %1516 = vmatmul.mubr.f32.gmra.mrb[0].mxu0 %v1449
          %v1517 = vpop.f32.mrb[0].mxu0
          %v1518 = vadd.f32 0.0, %v1517
          %v1519 = vpop.f32.mrb[0].mxu0
          %1520 = vdwg.mxu0
          %v1521 = vadd.f32 %v1518, 0.0
          %s1522 = vtos %v1521
          %v1523 = vmul.f32 %v908, %v908
          %v1524 = vmul.f32 %v909, %v909
          %v1525 = vmul.f32 %v910, %v910
          %v1526 = vmul.f32 %v911, %v911
          %v1527 = vmul.f32 %v912, %v912
          %v1528 = vmul.f32 %v913, %v913
          %v1529 = vmul.f32 %v914, %v914
          %v1530 = vmul.f32 %v915, %v915
          %v1531 = vmul.f32 %v916, %v916
          %v1532 = vmul.f32 %v917, %v917
          %v1533 = vmul.f32 %v918, %v918
          %v1534 = vmul.f32 %v919, %v919
          %v1535 = vmul.f32 %v920, %v920
          %v1536 = vmul.f32 %v921, %v921
          %v1537 = vmul.f32 %v922, %v922
          %v1538 = vmul.f32 %v923, %v923
          %vm1539 = vcmask 64512
          %v1540 = vsel %vm1539, %v1523, 0.0
          %1541 = vadd.xlane.f32.xlu0 %v1540
          %v1542 = vpop.xlane.xlu0 %1541
          %v1543 = vsel %vm1539, %v1524, 0.0
          %1544 = vadd.xlane.f32.xlu0 %v1543
          %v1545 = vpop.xlane.xlu0 %1544
          %v1546 = vsel %vm1539, %v1525, 0.0
          %1547 = vadd.xlane.f32.xlu0 %v1546
          %v1548 = vpop.xlane.xlu0 %1547
          %v1549 = vsel %vm1539, %v1526, 0.0
          %1550 = vadd.xlane.f32.xlu0 %v1549
          %v1551 = vpop.xlane.xlu0 %1550
          %v1552 = vsel %vm1539, %v1527, 0.0
          %1553 = vadd.xlane.f32.xlu0 %v1552
          %v1554 = vpop.xlane.xlu0 %1553
          %v1555 = vsel %vm1539, %v1528, 0.0
          %1556 = vadd.xlane.f32.xlu0 %v1555
          %v1557 = vpop.xlane.xlu0 %1556
          %v1558 = vsel %vm1539, %v1529, 0.0
          %1559 = vadd.xlane.f32.xlu0 %v1558
          %v1560 = vpop.xlane.xlu0 %1559
          %v1561 = vsel %vm1539, %v1530, 0.0
          %1562 = vadd.xlane.f32.xlu0 %v1561
          %v1563 = vpop.xlane.xlu0 %1562
          %v1564 = vsel %vm1539, %v1531, 0.0
          %1565 = vadd.xlane.f32.xlu0 %v1564
          %v1566 = vpop.xlane.xlu0 %1565
          %v1567 = vsel %vm1539, %v1532, 0.0
          %1568 = vadd.xlane.f32.xlu0 %v1567
          %v1569 = vpop.xlane.xlu0 %1568
          %v1570 = vsel %vm1539, %v1533, 0.0
          %1571 = vadd.xlane.f32.xlu0 %v1570
          %v1572 = vpop.xlane.xlu0 %1571
          %v1573 = vsel %vm1539, %v1534, 0.0
          %1574 = vadd.xlane.f32.xlu0 %v1573
          %v1575 = vpop.xlane.xlu0 %1574
          %v1576 = vsel %vm1539, %v1535, 0.0
          %1577 = vadd.xlane.f32.xlu0 %v1576
          %v1578 = vpop.xlane.xlu0 %1577
          %v1579 = vsel %vm1539, %v1536, 0.0
          %1580 = vadd.xlane.f32.xlu0 %v1579
          %v1581 = vpop.xlane.xlu0 %1580
          %v1582 = vsel %vm1539, %v1537, 0.0
          %1583 = vadd.xlane.f32.xlu0 %v1582
          %v1584 = vpop.xlane.xlu0 %1583
          %v1585 = vsel %vm1539, %v1538, 0.0
          %1586 = vadd.xlane.f32.xlu0 %v1585
          %v1587 = vpop.xlane.xlu0 %1586
          %v1588 = vrsqrt.pop %v1542
          %v1589 = vmul.f32 %v1542, %v1588
          %vm1590 = vcmp.eq.f32.partialorder %v1542, inf
          %v1591 = vsel %vm1590, %v1542, %v1589
          %vm1592 = vcmp.eq.f32.partialorder %v1542, 0.0
          %v1593 = vand.u32 %v1542, 2147483648
          %v1594 = vsel %vm1592, %v1593, %v1591
          %v1595 = vrsqrt.pop %v1545
          %v1596 = vmul.f32 %v1545, %v1595
          %vm1597 = vcmp.eq.f32.partialorder %v1545, inf
          %v1598 = vsel %vm1597, %v1545, %v1596
          %vm1599 = vcmp.eq.f32.partialorder %v1545, 0.0
          %v1600 = vand.u32 %v1545, 2147483648
          %v1601 = vsel %vm1599, %v1600, %v1598
          %v1602 = vrsqrt.pop %v1548
          %v1603 = vmul.f32 %v1548, %v1602
          %vm1604 = vcmp.eq.f32.partialorder %v1548, inf
          %v1605 = vsel %vm1604, %v1548, %v1603
          %vm1606 = vcmp.eq.f32.partialorder %v1548, 0.0
          %v1607 = vand.u32 %v1548, 2147483648
          %v1608 = vsel %vm1606, %v1607, %v1605
          %v1609 = vrsqrt.pop %v1551
          %v1610 = vmul.f32 %v1551, %v1609
          %vm1611 = vcmp.eq.f32.partialorder %v1551, inf
          %v1612 = vsel %vm1611, %v1551, %v1610
          %vm1613 = vcmp.eq.f32.partialorder %v1551, 0.0
          %v1614 = vand.u32 %v1551, 2147483648
          %v1615 = vsel %vm1613, %v1614, %v1612
          %v1616 = vrsqrt.pop %v1554
          %v1617 = vmul.f32 %v1554, %v1616
          %vm1618 = vcmp.eq.f32.partialorder %v1554, inf
          %v1619 = vsel %vm1618, %v1554, %v1617
          %vm1620 = vcmp.eq.f32.partialorder %v1554, 0.0
          %v1621 = vand.u32 %v1554, 2147483648
          %v1622 = vsel %vm1620, %v1621, %v1619
          %v1623 = vrsqrt.pop %v1557
          %v1624 = vmul.f32 %v1557, %v1623
          %vm1625 = vcmp.eq.f32.partialorder %v1557, inf
          %v1626 = vsel %vm1625, %v1557, %v1624
          %vm1627 = vcmp.eq.f32.partialorder %v1557, 0.0
          %v1628 = vand.u32 %v1557, 2147483648
          %v1629 = vsel %vm1627, %v1628, %v1626
          %v1630 = vrsqrt.pop %v1560
          %v1631 = vmul.f32 %v1560, %v1630
          %vm1632 = vcmp.eq.f32.partialorder %v1560, inf
          %v1633 = vsel %vm1632, %v1560, %v1631
          %vm1634 = vcmp.eq.f32.partialorder %v1560, 0.0
          %v1635 = vand.u32 %v1560, 2147483648
          %v1636 = vsel %vm1634, %v1635, %v1633
          %v1637 = vrsqrt.pop %v1563
          %v1638 = vmul.f32 %v1563, %v1637
          %vm1639 = vcmp.eq.f32.partialorder %v1563, inf
          %v1640 = vsel %vm1639, %v1563, %v1638
          %vm1641 = vcmp.eq.f32.partialorder %v1563, 0.0
          %v1642 = vand.u32 %v1563, 2147483648
          %v1643 = vsel %vm1641, %v1642, %v1640
          %v1644 = vrsqrt.pop %v1566
          %v1645 = vmul.f32 %v1566, %v1644
          %vm1646 = vcmp.eq.f32.partialorder %v1566, inf
          %v1647 = vsel %vm1646, %v1566, %v1645
          %vm1648 = vcmp.eq.f32.partialorder %v1566, 0.0
          %v1649 = vand.u32 %v1566, 2147483648
          %v1650 = vsel %vm1648, %v1649, %v1647
          %v1651 = vrsqrt.pop %v1569
          %v1652 = vmul.f32 %v1569, %v1651
          %vm1653 = vcmp.eq.f32.partialorder %v1569, inf
          %v1654 = vsel %vm1653, %v1569, %v1652
          %vm1655 = vcmp.eq.f32.partialorder %v1569, 0.0
          %v1656 = vand.u32 %v1569, 2147483648
          %v1657 = vsel %vm1655, %v1656, %v1654
          %v1658 = vrsqrt.pop %v1572
          %v1659 = vmul.f32 %v1572, %v1658
          %vm1660 = vcmp.eq.f32.partialorder %v1572, inf
          %v1661 = vsel %vm1660, %v1572, %v1659
          %vm1662 = vcmp.eq.f32.partialorder %v1572, 0.0
          %v1663 = vand.u32 %v1572, 2147483648
          %v1664 = vsel %vm1662, %v1663, %v1661
          %v1665 = vrsqrt.pop %v1575
          %v1666 = vmul.f32 %v1575, %v1665
          %vm1667 = vcmp.eq.f32.partialorder %v1575, inf
          %v1668 = vsel %vm1667, %v1575, %v1666
          %vm1669 = vcmp.eq.f32.partialorder %v1575, 0.0
          %v1670 = vand.u32 %v1575, 2147483648
          %v1671 = vsel %vm1669, %v1670, %v1668
          %v1672 = vrsqrt.pop %v1578
          %v1673 = vmul.f32 %v1578, %v1672
          %vm1674 = vcmp.eq.f32.partialorder %v1578, inf
          %v1675 = vsel %vm1674, %v1578, %v1673
          %vm1676 = vcmp.eq.f32.partialorder %v1578, 0.0
          %v1677 = vand.u32 %v1578, 2147483648
          %v1678 = vsel %vm1676, %v1677, %v1675
          %v1679 = vrsqrt.pop %v1581
          %v1680 = vmul.f32 %v1581, %v1679
          %vm1681 = vcmp.eq.f32.partialorder %v1581, inf
          %v1682 = vsel %vm1681, %v1581, %v1680
          %vm1683 = vcmp.eq.f32.partialorder %v1581, 0.0
          %v1684 = vand.u32 %v1581, 2147483648
          %v1685 = vsel %vm1683, %v1684, %v1682
          %v1686 = vrsqrt.pop %v1584
          %v1687 = vmul.f32 %v1584, %v1686
          %vm1688 = vcmp.eq.f32.partialorder %v1584, inf
          %v1689 = vsel %vm1688, %v1584, %v1687
          %vm1690 = vcmp.eq.f32.partialorder %v1584, 0.0
          %v1691 = vand.u32 %v1584, 2147483648
          %v1692 = vsel %vm1690, %v1691, %v1689
          %v1693 = vrsqrt.pop %v1587
          %v1694 = vmul.f32 %v1587, %v1693
          %vm1695 = vcmp.eq.f32.partialorder %v1587, inf
          %v1696 = vsel %vm1695, %v1587, %v1694
          %vm1697 = vcmp.eq.f32.partialorder %v1587, 0.0
          %v1698 = vand.u32 %v1587, 2147483648
          %v1699 = vsel %vm1697, %v1698, %v1696
          %v1700 = vmax.f32 %v1594, 1e-08
          %v1701 = vmax.f32 %v1601, 1e-08
          %v1702 = vmax.f32 %v1608, 1e-08
          %v1703 = vmax.f32 %v1615, 1e-08
          %v1704 = vmax.f32 %v1622, 1e-08
          %v1705 = vmax.f32 %v1629, 1e-08
          %v1706 = vmax.f32 %v1636, 1e-08
          %v1707 = vmax.f32 %v1643, 1e-08
          %v1708 = vmax.f32 %v1650, 1e-08
          %v1709 = vmax.f32 %v1657, 1e-08
          %v1710 = vmax.f32 %v1664, 1e-08
          %v1711 = vmax.f32 %v1671, 1e-08
          %v1712 = vmax.f32 %v1678, 1e-08
          %v1713 = vmax.f32 %v1685, 1e-08
          %v1714 = vmax.f32 %v1692, 1e-08
          %v1715 = vmax.f32 %v1699, 1e-08
          %v1716 = vrcp.pop %v1700
          %v1717 = vmul.f32 1.0, %v1716
          %v1718 = vrcp.pop %v1701
          %v1719 = vmul.f32 1.0, %v1718
          %v1720 = vrcp.pop %v1702
          %v1721 = vmul.f32 1.0, %v1720
          %v1722 = vrcp.pop %v1703
          %v1723 = vmul.f32 1.0, %v1722
          %v1724 = vrcp.pop %v1704
          %v1725 = vmul.f32 1.0, %v1724
          %v1726 = vrcp.pop %v1705
          %v1727 = vmul.f32 1.0, %v1726
          %v1728 = vrcp.pop %v1706
          %v1729 = vmul.f32 1.0, %v1728
          %v1730 = vrcp.pop %v1707
          %v1731 = vmul.f32 1.0, %v1730
          %v1732 = vrcp.pop %v1708
          %v1733 = vmul.f32 1.0, %v1732
          %v1734 = vrcp.pop %v1709
          %v1735 = vmul.f32 1.0, %v1734
          %v1736 = vrcp.pop %v1710
          %v1737 = vmul.f32 1.0, %v1736
          %v1738 = vrcp.pop %v1711
          %v1739 = vmul.f32 1.0, %v1738
          %v1740 = vrcp.pop %v1712
          %v1741 = vmul.f32 1.0, %v1740
          %v1742 = vrcp.pop %v1713
          %v1743 = vmul.f32 1.0, %v1742
          %v1744 = vrcp.pop %v1714
          %v1745 = vmul.f32 1.0, %v1744
          %v1746 = vrcp.pop %v1715
          %v1747 = vmul.f32 1.0, %v1746
          %v1748 = vmul.f32 %v908, %v1717
          %v1749 = vmul.f32 %v909, %v1719
          %v1750 = vmul.f32 %v910, %v1721
          %v1751 = vmul.f32 %v911, %v1723
          %v1752 = vmul.f32 %v912, %v1725
          %v1753 = vmul.f32 %v913, %v1727
          %v1754 = vmul.f32 %v914, %v1729
          %v1755 = vmul.f32 %v915, %v1731
          %v1756 = vmul.f32 %v916, %v1733
          %v1757 = vmul.f32 %v917, %v1735
          %v1758 = vmul.f32 %v918, %v1737
          %v1759 = vmul.f32 %v919, %v1739
          %v1760 = vmul.f32 %v920, %v1741
          %v1761 = vmul.f32 %v921, %v1743
          %v1762 = vmul.f32 %v922, %v1745
          %v1763 = vmul.f32 %v923, %v1747
          %v1764 = vmul.f32 %v924, %v924
          %v1765 = vmul.f32 %v925, %v925
          %v1766 = vmul.f32 %v926, %v926
          %v1767 = vmul.f32 %v927, %v927
          %v1768 = vmul.f32 %v928, %v928
          %v1769 = vmul.f32 %v929, %v929
          %v1770 = vmul.f32 %v930, %v930
          %v1771 = vmul.f32 %v931, %v931
          %v1772 = vmul.f32 %v932, %v932
          %v1773 = vmul.f32 %v933, %v933
          %v1774 = vmul.f32 %v934, %v934
          %v1775 = vmul.f32 %v935, %v935
          %v1776 = vsel %vm1539, %v1764, 0.0
          %1777 = vadd.xlane.f32.xlu0 %v1776
          %v1778 = vpop.xlane.xlu0 %1777
          %v1779 = vsel %vm1539, %v1765, 0.0
          %1780 = vadd.xlane.f32.xlu0 %v1779
          %v1781 = vpop.xlane.xlu0 %1780
          %v1782 = vsel %vm1539, %v1766, 0.0
          %1783 = vadd.xlane.f32.xlu0 %v1782
          %v1784 = vpop.xlane.xlu0 %1783
          %v1785 = vsel %vm1539, %v1767, 0.0
          %1786 = vadd.xlane.f32.xlu0 %v1785
          %v1787 = vpop.xlane.xlu0 %1786
          %v1788 = vsel %vm1539, %v1768, 0.0
          %1789 = vadd.xlane.f32.xlu0 %v1788
          %v1790 = vpop.xlane.xlu0 %1789
          %v1791 = vsel %vm1539, %v1769, 0.0
          %1792 = vadd.xlane.f32.xlu0 %v1791
          %v1793 = vpop.xlane.xlu0 %1792
          %v1794 = vsel %vm1539, %v1770, 0.0
          %1795 = vadd.xlane.f32.xlu0 %v1794
          %v1796 = vpop.xlane.xlu0 %1795
          %v1797 = vsel %vm1539, %v1771, 0.0
          %1798 = vadd.xlane.f32.xlu0 %v1797
          %v1799 = vpop.xlane.xlu0 %1798
          %v1800 = vsel %vm1539, %v1772, 0.0
          %1801 = vadd.xlane.f32.xlu0 %v1800
          %v1802 = vpop.xlane.xlu0 %1801
          %v1803 = vsel %vm1539, %v1773, 0.0
          %1804 = vadd.xlane.f32.xlu0 %v1803
          %v1805 = vpop.xlane.xlu0 %1804
          %v1806 = vsel %vm1539, %v1774, 0.0
          %1807 = vadd.xlane.f32.xlu0 %v1806
          %v1808 = vpop.xlane.xlu0 %1807
          %v1809 = vsel %vm1539, %v1775, 0.0
          %1810 = vadd.xlane.f32.xlu0 %v1809
          %v1811 = vpop.xlane.xlu0 %1810
          %v1812 = vrsqrt.pop %v1778
          %v1813 = vmul.f32 %v1778, %v1812
          %vm1814 = vcmp.eq.f32.partialorder %v1778, inf
          %v1815 = vsel %vm1814, %v1778, %v1813
          %vm1816 = vcmp.eq.f32.partialorder %v1778, 0.0
          %v1817 = vand.u32 %v1778, 2147483648
          %v1818 = vsel %vm1816, %v1817, %v1815
          %v1819 = vrsqrt.pop %v1781
          %v1820 = vmul.f32 %v1781, %v1819
          %vm1821 = vcmp.eq.f32.partialorder %v1781, inf
          %v1822 = vsel %vm1821, %v1781, %v1820
          %vm1823 = vcmp.eq.f32.partialorder %v1781, 0.0
          %v1824 = vand.u32 %v1781, 2147483648
          %v1825 = vsel %vm1823, %v1824, %v1822
          %v1826 = vrsqrt.pop %v1784
          %v1827 = vmul.f32 %v1784, %v1826
          %vm1828 = vcmp.eq.f32.partialorder %v1784, inf
          %v1829 = vsel %vm1828, %v1784, %v1827
          %vm1830 = vcmp.eq.f32.partialorder %v1784, 0.0
          %v1831 = vand.u32 %v1784, 2147483648
          %v1832 = vsel %vm1830, %v1831, %v1829
          %v1833 = vrsqrt.pop %v1787
          %v1834 = vmul.f32 %v1787, %v1833
          %vm1835 = vcmp.eq.f32.partialorder %v1787, inf
          %v1836 = vsel %vm1835, %v1787, %v1834
          %vm1837 = vcmp.eq.f32.partialorder %v1787, 0.0
          %v1838 = vand.u32 %v1787, 2147483648
          %v1839 = vsel %vm1837, %v1838, %v1836
          %v1840 = vrsqrt.pop %v1790
          %v1841 = vmul.f32 %v1790, %v1840
          %vm1842 = vcmp.eq.f32.partialorder %v1790, inf
          %v1843 = vsel %vm1842, %v1790, %v1841
          %vm1844 = vcmp.eq.f32.partialorder %v1790, 0.0
          %v1845 = vand.u32 %v1790, 2147483648
          %v1846 = vsel %vm1844, %v1845, %v1843
          %v1847 = vrsqrt.pop %v1793
          %v1848 = vmul.f32 %v1793, %v1847
          %vm1849 = vcmp.eq.f32.partialorder %v1793, inf
          %v1850 = vsel %vm1849, %v1793, %v1848
          %vm1851 = vcmp.eq.f32.partialorder %v1793, 0.0
          %v1852 = vand.u32 %v1793, 2147483648
          %v1853 = vsel %vm1851, %v1852, %v1850
          %v1854 = vrsqrt.pop %v1796
          %v1855 = vmul.f32 %v1796, %v1854
          %vm1856 = vcmp.eq.f32.partialorder %v1796, inf
          %v1857 = vsel %vm1856, %v1796, %v1855
          %vm1858 = vcmp.eq.f32.partialorder %v1796, 0.0
          %v1859 = vand.u32 %v1796, 2147483648
          %v1860 = vsel %vm1858, %v1859, %v1857
          %v1861 = vrsqrt.pop %v1799
          %v1862 = vmul.f32 %v1799, %v1861
          %vm1863 = vcmp.eq.f32.partialorder %v1799, inf
          %v1864 = vsel %vm1863, %v1799, %v1862
          %vm1865 = vcmp.eq.f32.partialorder %v1799, 0.0
          %v1866 = vand.u32 %v1799, 2147483648
          %v1867 = vsel %vm1865, %v1866, %v1864
          %v1868 = vrsqrt.pop %v1802
          %v1869 = vmul.f32 %v1802, %v1868
          %vm1870 = vcmp.eq.f32.partialorder %v1802, inf
          %v1871 = vsel %vm1870, %v1802, %v1869
          %vm1872 = vcmp.eq.f32.partialorder %v1802, 0.0
          %v1873 = vand.u32 %v1802, 2147483648
          %v1874 = vsel %vm1872, %v1873, %v1871
          %v1875 = vrsqrt.pop %v1805
          %v1876 = vmul.f32 %v1805, %v1875
          %vm1877 = vcmp.eq.f32.partialorder %v1805, inf
          %v1878 = vsel %vm1877, %v1805, %v1876
          %vm1879 = vcmp.eq.f32.partialorder %v1805, 0.0
          %v1880 = vand.u32 %v1805, 2147483648
          %v1881 = vsel %vm1879, %v1880, %v1878
          %v1882 = vrsqrt.pop %v1808
          %v1883 = vmul.f32 %v1808, %v1882
          %vm1884 = vcmp.eq.f32.partialorder %v1808, inf
          %v1885 = vsel %vm1884, %v1808, %v1883
          %vm1886 = vcmp.eq.f32.partialorder %v1808, 0.0
          %v1887 = vand.u32 %v1808, 2147483648
          %v1888 = vsel %vm1886, %v1887, %v1885
          %v1889 = vrsqrt.pop %v1811
          %v1890 = vmul.f32 %v1811, %v1889
          %vm1891 = vcmp.eq.f32.partialorder %v1811, inf
          %v1892 = vsel %vm1891, %v1811, %v1890
          %vm1893 = vcmp.eq.f32.partialorder %v1811, 0.0
          %v1894 = vand.u32 %v1811, 2147483648
          %v1895 = vsel %vm1893, %v1894, %v1892
          %v1896 = vmax.f32 %v1818, 1e-08
          %v1897 = vmax.f32 %v1825, 1e-08
          %v1898 = vmax.f32 %v1832, 1e-08
          %v1899 = vmax.f32 %v1839, 1e-08
          %v1900 = vmax.f32 %v1846, 1e-08
          %v1901 = vmax.f32 %v1853, 1e-08
          %v1902 = vmax.f32 %v1860, 1e-08
          %v1903 = vmax.f32 %v1867, 1e-08
          %v1904 = vmax.f32 %v1874, 1e-08
          %v1905 = vmax.f32 %v1881, 1e-08
          %v1906 = vmax.f32 %v1888, 1e-08
          %v1907 = vmax.f32 %v1895, 1e-08
          %v1908 = vrcp.pop %v1896
          %v1909 = vmul.f32 1.0, %v1908
          %v1910 = vrcp.pop %v1897
          %v1911 = vmul.f32 1.0, %v1910
          %v1912 = vrcp.pop %v1898
          %v1913 = vmul.f32 1.0, %v1912
          %v1914 = vrcp.pop %v1899
          %v1915 = vmul.f32 1.0, %v1914
          %v1916 = vrcp.pop %v1900
          %v1917 = vmul.f32 1.0, %v1916
          %v1918 = vrcp.pop %v1901
          %v1919 = vmul.f32 1.0, %v1918
          %v1920 = vrcp.pop %v1902
          %v1921 = vmul.f32 1.0, %v1920
          %v1922 = vrcp.pop %v1903
          %v1923 = vmul.f32 1.0, %v1922
          %v1924 = vrcp.pop %v1904
          %v1925 = vmul.f32 1.0, %v1924
          %v1926 = vrcp.pop %v1905
          %v1927 = vmul.f32 1.0, %v1926
          %v1928 = vrcp.pop %v1906
          %v1929 = vmul.f32 1.0, %v1928
          %v1930 = vrcp.pop %v1907
          %v1931 = vmul.f32 1.0, %v1930
          %v1932 = vmul.f32 %v924, %v1909
          %v1933 = vmul.f32 %v925, %v1911
          %v1934 = vmul.f32 %v926, %v1913
          %v1935 = vmul.f32 %v927, %v1915
          %v1936 = vmul.f32 %v928, %v1917
          %v1937 = vmul.f32 %v929, %v1919
          %v1938 = vmul.f32 %v930, %v1921
          %v1939 = vmul.f32 %v931, %v1923
          %v1940 = vmul.f32 %v932, %v1925
          %v1941 = vmul.f32 %v933, %v1927
          %v1942 = vmul.f32 %v934, %v1929
          %v1943 = vmul.f32 %v935, %v1931
          %1944 = vmatprep.subr.mxu0 0.0
          %1945 = vmatpush1.msra.mxu0 %v1932
          %1946 = vmatprep.subr.mxu0 0.0
          %1947 = vmatpush1.msra.mxu0 %v1933
          %1948 = vmatprep.subr.mxu0 0.0
          %1949 = vmatpush1.msra.mxu0 %v1934
          %1950 = vmatprep.subr.mxu0 0.0
          %1951 = vmatpush1.msra.mxu0 %v1935
          %1952 = vmatprep.subr.mxu0 0.0
          %1953 = vmatpush1.msra.mxu0 %v1936
          %1954 = vmatprep.subr.mxu0 0.0
          %1955 = vmatpush1.msra.mxu0 %v1937
          %1956 = vmatprep.subr.mxu0 0.0
          %1957 = vmatpush1.msra.mxu0 %v1938
          %1958 = vmatprep.subr.mxu0 0.0
          %1959 = vmatpush1.msra.mxu0 %v1939
          %1960 = vmatprep.subr.mxu0 0.0
          %1961 = vmatpush1.msra.mxu0 %v1940
          %1962 = vmatprep.subr.mxu0 0.0
          %1963 = vmatpush1.msra.mxu0 %v1941
          %1964 = vmatprep.subr.mxu0 0.0
          %1965 = vmatpush1.msra.mxu0 %v1942
          %1966 = vmatprep.subr.mxu0 0.0
          %1967 = vmatpush1.msra.mxu0 %v1943
          %1968 = vmatprep.subr.mxu0 0.0
          %1969 = vmatpush1.msra.mxu0 0.0
          %1970 = vmatprep.subr.mxu0 0.0
          %1971 = vmatpush1.msra.mxu0 0.0
          %1972 = vmatprep.subr.mxu0 0.0
          %1973 = vmatpush1.msra.mxu0 0.0
          %1974 = vmatprep.subr.mxu0 0.0
          %1975 = vmatpush1.msra.mxu0 0.0
          %1976 = vmatprep.subr.mxu0 0.0
          %1977 = vmatpush1.msra.mxu0 0.0
          %1978 = vmatprep.subr.mxu0 0.0
          %1979 = vmatpush1.msra.mxu0 0.0
          %1980 = vmatprep.subr.mxu0 0.0
          %1981 = vmatpush1.msra.mxu0 0.0
          %1982 = vmatprep.subr.mxu0 0.0
          %1983 = vmatpush1.msra.mxu0 0.0
          %1984 = vmatprep.subr.mxu0 0.0
          %1985 = vmatpush1.msra.mxu0 0.0
          %1986 = vmatprep.subr.mxu0 0.0
          %1987 = vmatpush1.msra.mxu0 0.0
          %1988 = vmatprep.subr.mxu0 0.0
          %1989 = vmatpush1.msra.mxu0 0.0
          %1990 = vmatprep.subr.mxu0 0.0
          %1991 = vmatpush1.msra.mxu0 0.0
          %1992 = vmatprep.subr.mxu0 0.0
          %1993 = vmatpush1.msra.mxu0 0.0
          %1994 = vmatprep.subr.mxu0 0.0
          %1995 = vmatpush1.msra.mxu0 0.0
          %1996 = vmatprep.subr.mxu0 0.0
          %1997 = vmatpush1.msra.mxu0 0.0
          %1998 = vmatprep.subr.mxu0 0.0
          %1999 = vmatpush1.msra.mxu0 0.0
          %2000 = vmatprep.subr.mxu0 0.0
          %2001 = vmatpush1.msra.mxu0 0.0
          %2002 = vmatprep.subr.mxu0 0.0
          %2003 = vmatpush1.msra.mxu0 0.0
          %2004 = vmatprep.subr.mxu0 0.0
          %2005 = vmatpush1.msra.mxu0 0.0
          %2006 = vmatprep.subr.mxu0 0.0
          %2007 = vmatpush1.msra.mxu0 0.0
          %2008 = vmatprep.mubr.f32.mxu0 0.0
          %2009 = vmatmul.mubr.f32.gmra.mrb[0].mxu0 %v937
          %v2010 = vpop.f32.mrb[0].mxu0
          %v2011 = vadd.f32 0.0, %v2010
          %v2012 = vpop.f32.mrb[0].mxu0
          %2013 = vmatprep.mubr.f32.mxu0 0.0
          %2014 = vmatmul.mubr.f32.gmra.mrb[0].mxu0 %v940
          %v2015 = vpop.f32.mrb[0].mxu0
          %v2016 = vadd.f32 0.0, %v2015
          %v2017 = vpop.f32.mrb[0].mxu0
          %2018 = vmatprep.mubr.f32.mxu0 0.0
          %2019 = vmatmul.mubr.f32.gmra.mrb[0].mxu0 %v943
          %v2020 = vpop.f32.mrb[0].mxu0
          %v2021 = vadd.f32 0.0, %v2020
          %v2022 = vpop.f32.mrb[0].mxu0
          %2023 = vmatprep.mubr.f32.mxu0 0.0
          %2024 = vmatmul.mubr.f32.gmra.mrb[0].mxu0 %v946
          %v2025 = vpop.f32.mrb[0].mxu0
          %v2026 = vadd.f32 0.0, %v2025
          %v2027 = vpop.f32.mrb[0].mxu0
          %2028 = vmatprep.mubr.f32.mxu0 0.0
          %2029 = vmatmul.mubr.f32.gmra.mrb[0].mxu0 %v949
          %v2030 = vpop.f32.mrb[0].mxu0
          %v2031 = vadd.f32 0.0, %v2030
          %v2032 = vpop.f32.mrb[0].mxu0
          %2033 = vmatprep.mubr.f32.mxu0 0.0
          %2034 = vmatmul.mubr.f32.gmra.mrb[0].mxu0 %v952
          %v2035 = vpop.f32.mrb[0].mxu0
          %v2036 = vadd.f32 0.0, %v2035
          %v2037 = vpop.f32.mrb[0].mxu0
          %2038 = vmatprep.mubr.f32.mxu0 0.0
          %2039 = vmatmul.mubr.f32.gmra.mrb[0].mxu0 %v955
          %v2040 = vpop.f32.mrb[0].mxu0
          %v2041 = vadd.f32 0.0, %v2040
          %v2042 = vpop.f32.mrb[0].mxu0
          %2043 = vmatprep.mubr.f32.mxu0 0.0
          %2044 = vmatmul.mubr.f32.gmra.mrb[0].mxu0 %v958
          %v2045 = vpop.f32.mrb[0].mxu0
          %v2046 = vadd.f32 0.0, %v2045
          %v2047 = vpop.f32.mrb[0].mxu0
          %2048 = vmatprep.mubr.f32.mxu0 0.0
          %2049 = vmatmul.mubr.f32.gmra.mrb[0].mxu0 %v961
          %v2050 = vpop.f32.mrb[0].mxu0
          %v2051 = vadd.f32 0.0, %v2050
          %v2052 = vpop.f32.mrb[0].mxu0
          %2053 = vmatprep.mubr.f32.mxu0 0.0
          %2054 = vmatmul.mubr.f32.gmra.mrb[0].mxu0 %v964
          %v2055 = vpop.f32.mrb[0].mxu0
          %v2056 = vadd.f32 0.0, %v2055
          %v2057 = vpop.f32.mrb[0].mxu0
          %2058 = vmatprep.mubr.f32.mxu0 0.0
          %2059 = vmatmul.mubr.f32.gmra.mrb[0].mxu0 %v967
          %v2060 = vpop.f32.mrb[0].mxu0
          %v2061 = vadd.f32 0.0, %v2060
          %v2062 = vpop.f32.mrb[0].mxu0
          %2063 = vmatprep.mubr.f32.mxu0 0.0
          %2064 = vmatmul.mubr.f32.gmra.mrb[0].mxu0 %v970
          %v2065 = vpop.f32.mrb[0].mxu0
          %v2066 = vadd.f32 0.0, %v2065
          %v2067 = vpop.f32.mrb[0].mxu0
          %2068 = vmatprep.mubr.f32.mxu0 0.0
          %2069 = vmatmul.mubr.f32.gmra.mrb[0].mxu0 %v973
          %v2070 = vpop.f32.mrb[0].mxu0
          %v2071 = vadd.f32 0.0, %v2070
          %v2072 = vpop.f32.mrb[0].mxu0
          %2073 = vmatprep.mubr.f32.mxu0 0.0
          %2074 = vmatmul.mubr.f32.gmra.mrb[0].mxu0 %v976
          %v2075 = vpop.f32.mrb[0].mxu0
          %v2076 = vadd.f32 0.0, %v2075
          %v2077 = vpop.f32.mrb[0].mxu0
          %2078 = vmatprep.mubr.f32.mxu0 0.0
          %2079 = vmatmul.mubr.f32.gmra.mrb[0].mxu0 %v979
          %v2080 = vpop.f32.mrb[0].mxu0
          %v2081 = vadd.f32 0.0, %v2080
          %v2082 = vpop.f32.mrb[0].mxu0
          %2083 = vmatprep.mubr.f32.mxu0 0.0
          %2084 = vmatmul.mubr.f32.gmra.mrb[0].mxu0 %v982
          %v2085 = vpop.f32.mrb[0].mxu0
          %v2086 = vadd.f32 0.0, %v2085
          %v2087 = vpop.f32.mrb[0].mxu0
          %2088 = vdwg.mxu0
          %v2089 = vmul.f32 %v1748, %v2011
          %v2090 = vmul.f32 %v1749, %v2016
          %v2091 = vmul.f32 %v1750, %v2021
          %v2092 = vmul.f32 %v1751, %v2026
          %v2093 = vmul.f32 %v1752, %v2031
          %v2094 = vmul.f32 %v1753, %v2036
          %v2095 = vmul.f32 %v1754, %v2041
          %v2096 = vmul.f32 %v1755, %v2046
          %v2097 = vmul.f32 %v1756, %v2051
          %v2098 = vmul.f32 %v1757, %v2056
          %v2099 = vmul.f32 %v1758, %v2061
          %v2100 = vmul.f32 %v1759, %v2066
          %v2101 = vmul.f32 %v1760, %v2071
          %v2102 = vmul.f32 %v1761, %v2076
          %v2103 = vmul.f32 %v1762, %v2081
          %v2104 = vmul.f32 %v1763, %v2086
          %v2105 = vsel %vm1539, %v2089, 0.0
          %v2106 = vsel %vm1539, %v2090, 0.0
          %v2107 = vadd.f32 %v2105, %v2106
          %v2108 = vsel %vm1539, %v2091, 0.0
          %v2109 = vadd.f32 %v2107, %v2108
          %v2110 = vsel %vm1539, %v2092, 0.0
          %v2111 = vadd.f32 %v2109, %v2110
          %v2112 = vsel %vm1539, %v2093, 0.0
          %v2113 = vadd.f32 %v2111, %v2112
          %v2114 = vsel %vm1539, %v2094, 0.0
          %v2115 = vadd.f32 %v2113, %v2114
          %v2116 = vsel %vm1539, %v2095, 0.0
          %v2117 = vadd.f32 %v2115, %v2116
          %v2118 = vsel %vm1539, %v2096, 0.0
          %v2119 = vadd.f32 %v2117, %v2118
          %v2120 = vsel %vm1539, %v2097, 0.0
          %v2121 = vadd.f32 %v2119, %v2120
          %v2122 = vsel %vm1539, %v2098, 0.0
          %v2123 = vadd.f32 %v2121, %v2122
          %v2124 = vsel %vm1539, %v2099, 0.0
          %v2125 = vadd.f32 %v2123, %v2124
          %v2126 = vsel %vm1539, %v2100, 0.0
          %v2127 = vadd.f32 %v2125, %v2126
          %v2128 = vsel %vm1539, %v2101, 0.0
          %v2129 = vadd.f32 %v2127, %v2128
          %v2130 = vsel %vm1539, %v2102, 0.0
          %v2131 = vadd.f32 %v2129, %v2130
          %v2132 = vsel %vm1539, %v2103, 0.0
          %v2133 = vadd.f32 %v2131, %v2132
          %v2134 = vsel %vm1539, %v2104, 0.0
          %v2135 = vadd.f32 %v2133, %v2134
          %2136 = vadd.xlane.f32.xlu0 %v2135
          %v2137 = vpop.xlane.xlu0 %2136
          %v2138 = vrot.slane %v2137, 4
          %v2139 = vadd.f32 %v2137, %v2138
          %v2140 = vrot.slane %v2139, 2
          %v2141 = vadd.f32 %v2139, %v2140
          %v2142 = vrot.slane %v2141, 1
          %v2143 = vadd.f32 %v2141, %v2142
          %s2144 = vtos %v2143
          %s2145 = sld [smem:[#allocation4]]
          %s2146 = sadd.f32 %s1320, %s1522
          %s2147 = smul.f32 %s1200, 2.0
          %s2148 = ssub.f32 %s2146, %s2147
          %s2149 = ssub.f32 %s1360, %s2144
          %s2150 = smul.f32 %s2149, 0.5
          %s2151 = sadd.f32 %s2148, %s2150
          %s2152 = sadd.f32 %s2145, %s2151
          %s2153 = scalar_lea.smem [#allocation4], 0
          %2154 = sst [smem:[%s2153]] %s2152
          %p2155 = scmp.eq.s32.totalorder %s24, 1
          // Predicated region
          $region103: #{tpu_custom_call.1} parent=101 // pred_check
            %p2156 = pneg %p2155
          $region104: #{tpu_custom_call.1} parent=101 // pred_check_branch
            %2158 = sbr.rel (%p2156) target = $region106
          $region105: #{tpu_custom_call.1} parent=101 // pred_region
            %s2159 = sld [smem:[#allocation4]]
            %v2160 = vstv %s2159
            %vm2161 = vcmask 0
            %2162 = vst.msk [vmem:[#allocation6] sm:$0x1] %vm2161, %v2160
          $region106: #{tpu_custom_call.1} parent=101 // pred_fallthru
            _
        $region102: #{tpu_custom_call.1} parent=85 // pred_fallthru
          _
        // Predicated region
        $region107: #{tpu_custom_call.1} parent=85 // pred_check
          %p2163 = pneg %p240
        $region108: #{tpu_custom_call.1} parent=85 // pred_check_branch
          %2165 = sbr.rel (%p2163) target = $region110
        $region109: #{tpu_custom_call.1} parent=85 // pred_region
          %s2167 = ssub.s32 16, 16
          %2168 = vsyncadd [#allocation7], %s2167
          %s2170 = sshll.u32 [#allocation6], 4
          %s2171 = int_to_ptr.vmem [resolvable:$true] %s2170
          %2173 = dma.vmem_to_hbm [thread:$0]  %s2171, 16, %s8, [#allocation7]
        $region110: #{tpu_custom_call.1} parent=85 // pred_fallthru
          _
        // Predicated region
        $region111: #{tpu_custom_call.1} parent=85 // pred_check
          %p2174 = pneg %p240
        $region112: #{tpu_custom_call.1} parent=85 // pred_check_branch
          %2176 = sbr.rel (%p2174) target = $region114
        $region113: #{tpu_custom_call.1} parent=85 // pred_region
          %2177 = dma.done [#allocation7], 16
        $region114: #{tpu_custom_call.1} parent=85 // pred_fallthru
          _
      $region86: #{tpu_custom_call.1} parent=5 // pred_fallthru
        _
      %p2178 = scmp.le.s32.totalorder 2, %s15
      // Predicated region
      $region115: #{tpu_custom_call.1} parent=5 // pred_check
        %p2179 = pneg %p2178
      $region116: #{tpu_custom_call.1} parent=5 // pred_check_branch
        %2181 = sbr.rel (%p2179) target = $region118
      $region117: #{tpu_custom_call.1} parent=5 // pred_region
        %s2182 = ssub.s32 %s15, 2
      $region118: #{tpu_custom_call.1} parent=5 // pred_fallthru
        _
    $region6: #{tpu_custom_call.1} parent=1 // loop_footer
      %s19 = sadd.s32 1, %s15
    $region7: #{tpu_custom_call.1} parent=1 // loop_footer_branch
      %14 = sbr.rel target = $region3
    $region8: #{tpu_custom_call.1} parent=1 // loop_exit
      _
    %2183 = vsyncpa [#allocation7], 1
    %s2184 = scalar_lea.sflag [#allocation7], 1
    %2185 = vsyncpa %s2184, 1

</llo_original>
